<compile_context>
chip_gen: v5e
topology: v5e:2x2
jax: 0.10.0
libtpu: 0.0.40
codegen_flags: <defaults>
</compile_context>

<pallas_src>
import functools

import numpy as np
import jax
import jax.numpy as jnp
from jax.experimental import pallas as pl
from jax.experimental.pallas import tpu as pltpu


# ----------------------------- Pallas kernel ---------------------------------

def _softplus(x):
    # numerically-stable softplus; BCEwithLogits(x, 1) = softplus(-x),
    # BCEwithLogits(x, 0) = softplus(x)
    return jnp.maximum(x, 0.0) + jnp.log1p(jnp.exp(-jnp.abs(x)))


def matcher_cost_kernel(cc_class, cc_mask, cc_dice, cc_dist,
                        mask_logits_ref, portion_logits_ref, presence_ref,
                        segmap_ref, qvec_ref, true_pos_t_ref,
                        cost_ref,
                        lhs_bce_ref, lhs_dice_ref, acc_bce_ref, acc_dice_ref,
                        neg_sum_ref, pred_sum_ref):
    f32 = jnp.float32
    bf16 = jnp.bfloat16
    k = pl.program_id(1)

    Q = mask_logits_ref.shape[1]
    QP = lhs_bce_ref.shape[1]          # Q + 8 (8 constant tail rows)

    @pl.when(k == 0)
    def _init():
        acc_bce_ref[...] = jnp.zeros_like(acc_bce_ref)
        acc_dice_ref[...] = jnp.zeros_like(acc_dice_ref)
        neg_sum_ref[...] = jnp.zeros_like(neg_sum_ref)
        pred_sum_ref[...] = jnp.zeros_like(pred_sum_ref)
        # Constant tail of both LHS operands, written ONCE per batch block:
        # row Q is all-ones (yields lane-oriented per-electron column sums out of
        # the MXU: t_bin counts -> nnz, seg_sum), remaining tail rows are zero.
        bt, _, thw = lhs_bce_ref.shape
        tail = (jax.lax.broadcasted_iota(jnp.int32, (bt, QP - Q, thw), 1) == 0
                ).astype(bf16)
        lhs_bce_ref[:, Q:, :] = tail
        lhs_dice_ref[:, Q:, :] = tail

    ml = mask_logits_ref[...]                        # (bt, Q, thw) bf16
    pol = portion_logits_ref[...]                    # (bt, Q, thw) bf16
    pk = presence_ref[...]                           # (bt, Q, thw) bf16 in {0,1,2,3}
    seg = segmap_ref[...]                            # (bt, E, thw) f32

    pp = pk >= 2.0                                   # portion stored (bool)
    mp = jnp.logical_or(pk == 1.0, pk == 3.0)        # mask stored (bool)
    t_bin = (seg != 0.0).astype(bf16)                # binarized targets (exact in bf16)

    # --- bf16 MXU operands stored straight into the persistent LHS scratches ---
    lhs_bce_ref[:, :Q, :] = jnp.where(mp, ml, jnp.zeros_like(ml))       # bf16
    pred = jnp.where(pp, jax.nn.sigmoid(pol.astype(f32)), 0.0)           # f32
    lhs_dice_ref[:, :Q, :] = pred.astype(bf16)

    # --- two bf16 MXU contractions over this HW tile, f32 accumulation ---------
    acc_bce_ref[...] += jnp.einsum("bqh,beh->bqe",
                                   lhs_bce_ref[...], t_bin,
                                   preferred_element_type=f32)
    acc_dice_ref[...] += jnp.einsum("bqh,beh->bqe",
                                    lhs_dice_ref[...], seg.astype(bf16),
                                    preferred_element_type=f32)

    # --- f32 per-query row sums on the XLU (its slot has slack) ----------------
    neg = jnp.where(mp, _softplus(ml.astype(f32)), 0.0)   # BCE(logit, 0) at stored
    neg_sum_ref[...] += jnp.sum(neg, axis=-1, keepdims=True)
    pred_sum_ref[...] += jnp.sum(pred, axis=-1, keepdims=True)

    @pl.when(k == pl.num_programs(1) - 1)
    def _finalize():
        ml_dot_tbin = acc_bce_ref[:, :Q, :]               # (bt, Q, E)  (mp*ml)@t_bin^T
        pred_dot_seg = acc_dice_ref[:, :Q, :]             # (bt, Q, E)  pred @ seg^T
        tbin_cnt = acc_bce_ref[:, Q:Q + 1, :]             # (bt, 1, E)  per-electron nnz
        seg_sum = acc_dice_ref[:, Q:Q + 1, :]             # (bt, 1, E)
        neg_sum = neg_sum_ref[...]                        # (bt, Q, 1)
        pred_sum = pred_sum_ref[...]                      # (bt, Q, 1)

        # ---- BCE ("mask") cost via softplus(-x) - softplus(x) = -x ------------
        nnz = jnp.maximum(jnp.sum(tbin_cnt, axis=-1, keepdims=True), 1.0)
        bce_cost = (neg_sum - ml_dot_tbin) * pl.reciprocal(nnz, approx=True)

        # ---- Dice cost ---------------------------------------------------------
        dice_cost = 1.0 - (2.0 * pred_dot_seg + 1.0) * pl.reciprocal(
            pred_sum + seg_sum + 1.0, approx=True)

        # ---- Class cost: BCE(is_electron_logit, 1), broadcast over electrons ---
        qv = qvec_ref[...].astype(jnp.float32)            # (bt, Q, 3): [elec, r, c]
        class_cost = _softplus(-qv[:, :, 0:1])            # (bt, Q, 1)

        # ---- Huber distance cost (delta=1), mean over the 2 coordinates --------
        ep = true_pos_t_ref[...].astype(jnp.float32)      # (bt, 2, E)
        dr = qv[:, :, 1:2] - ep[:, 0:1, :]                # (bt, Q, E)
        dc = qv[:, :, 2:3] - ep[:, 1:2, :]
        adr = jnp.abs(dr)
        adc = jnp.abs(dc)
        hr = jnp.where(adr <= 1.0, 0.5 * dr * dr, adr - 0.5)
        hc = jnp.where(adc <= 1.0, 0.5 * dc * dc, adc - 0.5)
        dist_cost = 0.5 * (hr + hc)

        cost_ref[...] = (cc_class * class_cost + cc_mask * bce_cost
                         + cc_dice * dice_cost + cc_dist * dist_cost
                         ).astype(cost_ref.dtype)


# ------------------------- generation-aware sizing ----------------------------

def _vmem_capacity_bytes():
    try:
        info = pltpu.get_tpu_info()
        for attr in ("vmem_capacity_bytes", "vmem_size_bytes", "vmem_bytes"):
            v = getattr(info, attr, None)
            if isinstance(v, int) and v > 0:
                return int(v)
    except Exception:
        pass
    return 64 << 20   # conservative fallback (v7x per-core VMEM)


def _per_batch_vmem_bytes(Q, E, thw):
    """VMEM per batch element, including in-kernel temporaries (review item 4)."""
    QP = Q + 8
    inputs = 2 * (3 * Q * thw * 2 + E * thw * 4)          # double-buffered big inputs
    small = 2 * (Q * 3 * 4 + 2 * E * 4 + Q * E * 4)
    scratch = 2 * QP * thw * 2 + 2 * QP * E * 4 + 2 * Q * 128 * 4
    temps = 6 * Q * thw * 4 + 2 * E * thw * 4              # f32 elementwise temporaries
    return inputs + small + scratch + temps


def _pick_hw_block(HW, max_thw=4096, min_thw=512):
    """Return (thw, padded_HW).  thw >= 512 keeps DMA rows >= 1 KB contiguous."""
    if HW <= max_thw:
        return HW, HW
    for t in range(max_thw, min_thw - 1, -512):
        if HW % t == 0:
            return t, HW
    # TODO(synk): production inputs should arrive zero-padded upstream; padding here
    # costs one extra pass over the big slabs.
    hw_pad = pl.cdiv(HW, max_thw) * max_thw
    return max_thw, hw_pad


def _pick_blocks(B, Q, E, HW, hw_block=None, batch_block=None):
    vmem_cap = _vmem_capacity_bytes()                     # 128 MiB v5e/v6e, 64 MiB v7x
    vmem_limit = int(min(vmem_cap * 3 // 4, 96 << 20))
    budget = vmem_limit // 2                              # headroom for compiler temps

    if hw_block is not None:
        thw = int(hw_block)
        hw_pad = pl.cdiv(HW, thw) * thw
    else:
        thw, hw_pad = _pick_hw_block(HW)
        while thw > 512 and _per_batch_vmem_bytes(Q, E, thw) > budget:
            nt = thw // 2
            if nt % 128 or hw_pad % nt:
                break
            thw = nt

    if batch_block is not None:
        bt = int(batch_block)
    else:
        # >= 2 blocks on the parallel batch axis so both v7x TensorCores get work.
        bt_cap = max(1, B // 2)
        per_b = _per_batch_vmem_bytes(Q, E, thw)
        bt = int(max(1, min(bt_cap, budget // max(per_b, 1))))
        # grow until each step moves ~2 MiB of HBM (amortize ~0.35 us/step overhead)
        step_bytes = thw * (3 * Q * 2 + E * 4)
        while (bt < bt_cap and bt * step_bytes < (2 << 20)
               and (bt + 1) * per_b <= budget):
            bt += 1
        while B % bt:
            bt -= 1
    return bt, thw, hw_pad, vmem_limit


# ------------------------------ wrapper ---------------------------------------

def compute_cost_matrices(mask_logits, portion_logits, presence, segmap,
                          elec_logit, pred_pos, true_pos,
                          cost_coef_class=1.0, cost_coef_mask=1.0,
                          cost_coef_dice=1.0, cost_coef_dist=1.0,
                          hw_block=None, batch_block=None):
    B, Q, HW = mask_logits.shape
    E = segmap.shape[1]

    # Kernel-native dtypes.  When upstream already produces them (as in the demo)
    # these casts are no-ops and add no extra HBM passes.
    ml = mask_logits.astype(jnp.bfloat16)
    pol = portion_logits.astype(jnp.bfloat16)
    pres = presence.astype(jnp.bfloat16)
    seg = segmap.astype(jnp.float32)
    # Tiny side inputs (merged / transposed; negligible HBM traffic).
    qvec = jnp.concatenate([elec_logit.astype(jnp.float32),
                            pred_pos.astype(jnp.float32)], axis=-1)        # (B, Q, 3)
    true_pos_t = jnp.transpose(true_pos.astype(jnp.float32), (0, 2, 1))    # (B, 2, E)

    bt, thw, hw_pad, vmem_limit = _pick_blocks(B, Q, E, HW, hw_block, batch_block)
    assert B % bt == 0
    assert hw_pad % thw == 0 and (thw % 128 == 0 or thw == hw_pad)

    if hw_pad != HW:
        # Zero padding is numerically safe: presence, t_bin and seg are all zero in
        # the padding, so no accumulated term changes.
        padw = ((0, 0), (0, 0), (0, hw_pad - HW))
        ml = jnp.pad(ml, padw)
        pol = jnp.pad(pol, padw)
        pres = jnp.pad(pres, padw)
        seg = jnp.pad(seg, padw)

    kernel = functools.partial(
        matcher_cost_kernel,
        float(cost_coef_class), float(cost_coef_mask),
        float(cost_coef_dice), float(cost_coef_dist))

    QP = Q + 8
    grid = (B // bt, hw_pad // thw)
    in_specs = [
        pl.BlockSpec((bt, Q, thw), lambda b, k: (b, 0, k)),   # mask logits (bf16)
        pl.BlockSpec((bt, Q, thw), lambda b, k: (b, 0, k)),   # portion logits (bf16)
        pl.BlockSpec((bt, Q, thw), lambda b, k: (b, 0, k)),   # packed presence (bf16)
        pl.BlockSpec((bt, E, thw), lambda b, k: (b, 0, k)),   # segmap (f32)
        pl.BlockSpec((bt, Q, 3),   lambda b, k: (b, 0, 0)),   # [elec | predicted pos]
        pl.BlockSpec((bt, 2, E),   lambda b, k: (b, 0, 0)),   # true positions^T
    ]
    out_specs = pl.BlockSpec((bt, Q, E), lambda b, k: (b, 0, 0))

    return pl.pallas_call(
        kernel,
        out_shape=jax.ShapeDtypeStruct((B, Q, E), jnp.float32),
        grid_spec=pltpu.PrefetchScalarGridSpec(
            num_scalar_prefetch=0,
            grid=grid,
            in_specs=in_specs,
            out_specs=out_specs,
            scratch_shapes=[
                pltpu.VMEM((bt, QP, thw), jnp.bfloat16),   # LHS for the BCE matmul
                pltpu.VMEM((bt, QP, thw), jnp.bfloat16),   # LHS for the dice matmul
                pltpu.VMEM((bt, QP, E), jnp.float32),      # BCE accumulator
                pltpu.VMEM((bt, QP, E), jnp.float32),      # dice accumulator
                pltpu.VMEM((bt, Q, 1), jnp.float32),       # neg_sum (f32, XLU)
                pltpu.VMEM((bt, Q, 1), jnp.float32),       # pred_sum (f32, XLU)
            ]),
        compiler_params=pltpu.CompilerParams(
            dimension_semantics=("parallel", "arbitrary"),
            vmem_limit_bytes=vmem_limit),
    )(ml, pol, pres, seg, qvec, true_pos_t)


# --------------------- host-side Hungarian assignment ------------------------
# TODO(synk): linear_sum_assignment is a serial, data-dependent algorithm with no
# Pallas equivalent; done on host in numpy (Jonker-Volgenant augmenting path).
def linear_sum_assignment_np(cost):
    cost = np.asarray(cost, dtype=np.float64)
    transposed = False
    if cost.shape[0] > cost.shape[1]:
        cost = cost.T
        transposed = True
    n, m = cost.shape
    INF = float("inf")
    u = np.zeros(n + 1)
    v = np.zeros(m + 1)
    p = np.zeros(m + 1, dtype=np.int64)
    way = np.zeros(m + 1, dtype=np.int64)
    for i in range(1, n + 1):
        p[0] = i
        j0 = 0
        minv = np.full(m + 1, INF)
        used = np.zeros(m + 1, dtype=bool)
        while True:
            used[j0] = True
            i0 = p[j0]
            delta = INF
            j1 = -1
            for j in range(1, m + 1):
                if not used[j]:
                    cur = cost[i0 - 1, j - 1] - u[i0] - v[j]
                    if cur < minv[j]:
                        minv[j] = cur
                        way[j] = j0
                    if minv[j] < delta:
                        delta = minv[j]
                        j1 = j
            for j in range(m + 1):
                if used[j]:
                    u[p[j]] += delta
                    v[j] -= delta
                else:
                    minv[j] -= delta
            j0 = j1
            if p[j0] == 0:
                break
        while j0:
            j1 = way[j0]
            p[j0] = p[j1]
            j0 = j1
    rows, cols = [], []
    for j in range(1, m + 1):
        if p[j] != 0:
            rows.append(p[j] - 1)
            cols.append(j - 1)
    rows = np.asarray(rows, dtype=np.int64)
    cols = np.asarray(cols, dtype=np.int64)
    if transposed:
        rows, cols = cols, rows
    order = np.argsort(rows)
    return rows[order], cols[order]


class HungarianMatcherPallas:
    # TODO(synk): ragged per-batch Q/E (batch_offsets) are modeled as fixed Q/E per
    # batch; if padding is used upstream, mask padded rows/cols with a large sentinel
    # cost before the host assignment.
    def __init__(self, cost_coef_class=1.0, cost_coef_mask=1.0,
                 cost_coef_dice=1.0, cost_coef_dist=1.0,
                 hw_block=None, batch_block=None):
        self.cost_coef_class = cost_coef_class
        self.cost_coef_mask = cost_coef_mask
        self.cost_coef_dice = cost_coef_dice
        self.cost_coef_dist = cost_coef_dist
        self.hw_block = hw_block
        self.batch_block = batch_block

    def __call__(self, predicted_dict, target_dict):
        pred = predicted_dict
        if "presence_dense" in pred:
            presence = pred["presence_dense"]
        else:
            # TODO(synk): packing here costs an extra pass over the (B,Q,HW) slabs;
            # produce the packed bf16 presence upstream instead.
            presence = (pred["binary_mask_present"].astype(jnp.bfloat16)
                        + 2.0 * pred["portion_present"].astype(jnp.bfloat16))
        cost = compute_cost_matrices(
            pred["binary_mask_logits_dense"],
            pred["portion_logits_dense"],
            presence,
            target_dict["segmentation_mask_dense"],
            pred["is_electron_logit"],
            pred["positions"],
            target_dict["incidence_points_pixels_rc"],
            self.cost_coef_class, self.cost_coef_mask,
            self.cost_coef_dice, self.cost_coef_dist,
            hw_block=self.hw_block, batch_block=self.batch_block,
        )
        cost = jax.block_until_ready(cost)
        cost_np = np.asarray(cost)
        if any(c.shape[0] < c.shape[1] for c in cost_np):
            print(f"Got fewer queries than electrons: "
                  f"{[c.shape for c in cost_np]}")
        indices = [linear_sum_assignment_np(c) for c in cost_np]
        return cost, [jnp.stack([jnp.asarray(i), jnp.asarray(j)])
                      for i, j in indices]


# --------------------------- reference (numpy) --------------------------------

def _np_softplus(x):
    return np.maximum(x, 0.0) + np.log1p(np.exp(-np.abs(x)))


def reference_cost(ml, mp, pol, pp, seg, elec, qpos, epos,
                   cc_class, cc_mask, cc_dice, cc_dist):
    B, Q, HW = ml.shape
    E = seg.shape[1]
    out = np.zeros((B, Q, E), np.float64)
    for b in range(B):
        pos = mp[b] * _np_softplus(-ml[b])
        neg = mp[b] * _np_softplus(ml[b])
        t_bin = (seg[b] != 0).astype(np.float64)
        nnz = max(t_bin.sum(), 1.0)
        bce = (pos @ t_bin.T + neg.sum(1, keepdims=True) - neg @ t_bin.T) / nnz
        pred = pp[b] * (1.0 / (1.0 + np.exp(-pol[b])))
        num = 2.0 * (pred @ seg[b].T)
        den = pred.sum(1, keepdims=True) + seg[b].sum(1)[None, :]
        dice = 1.0 - (num + 1.0) / (den + 1.0)
        clas = _np_softplus(-elec[b])
        d = qpos[b][:, None, :] - epos[b][None, :, :]
        ad = np.abs(d)
        hub = np.where(ad <= 1.0, 0.5 * d * d, ad - 0.5).mean(-1)
        out[b] = cc_class * clas + cc_mask * bce + cc_dice * dice + cc_dist * hub
    return out


# ------------------------------------ main ------------------------------------

if __name__ == "__main__":
    B, Q, E, H, W = 2, 16, 8, 32, 32
    HW = H * W
    key = jax.random.PRNGKey(0)
    ks = jax.random.split(key, 9)

    def bf16_exact(x):
        # values round-trip through bf16 so the kernel's compact dtypes introduce
        # no quantization vs. the f64 reference
        return x.astype(jnp.bfloat16).astype(jnp.float32)

    # Inputs produced "upstream" already in kernel-native layouts (review item 9).
    mask_logits = jax.random.normal(ks[0], (B, Q, HW), jnp.float32).astype(jnp.bfloat16)
    portion_logits = jax.random.normal(ks[2], (B, Q, HW), jnp.float32).astype(jnp.bfloat16)
    mask_present = jax.random.uniform(ks[1], (B, Q, HW)) < 0.3
    portion_present = jax.random.uniform(ks[3], (B, Q, HW)) < 0.3
    presence = (mask_present.astype(jnp.float32)
                + 2.0 * portion_present.astype(jnp.float32)).astype(jnp.bfloat16)
    segmap = bf16_exact(
        (jax.random.uniform(ks[4], (B, E, HW)) < 0.15).astype(jnp.float32)
        * jax.random.uniform(ks[5], (B, E, HW), minval=0.1, maxval=1.0))
    elec_logit = jax.random.normal(ks[6], (B, Q, 1), jnp.float32)
    pred_pos = jax.random.uniform(ks[7], (B, Q, 2), jnp.float32) * float(H)
    true_pos = jax.random.uniform(ks[8], (B, E, 2), jnp.float32) * float(H)

    predicted_dict = {
        "binary_mask_logits_dense": mask_logits,
        "portion_logits_dense": portion_logits,
        "presence_dense": presence,
        "is_electron_logit": elec_logit,
        "positions": pred_pos,
    }
    target_dict = {
        "segmentation_mask_dense": segmap,
        "incidence_points_pixels_rc": true_pos,
    }

    ref = reference_cost(
        np.asarray(mask_logits.astype(jnp.float32)),
        np.asarray(mask_present.astype(jnp.float32)),
        np.asarray(portion_logits.astype(jnp.float32)),
        np.asarray(portion_present.astype(jnp.float32)),
        np.asarray(segmap), np.asarray(elec_logit),
        np.asarray(pred_pos), np.asarray(true_pos),
        1.0, 1.0, 1.0, 1.0)

    # Path 1: default (generation-aware) block picking -> single HW step here.
    cost_default = compute_cost_matrices(
        mask_logits, portion_logits, presence, segmap,
        elec_logit, pred_pos, true_pos, 1.0, 1.0, 1.0, 1.0)
    cost_default = np.asarray(jax.block_until_ready(cost_default))

    # Path 2: forced HW split (test-only hw_block) exercises the cross-tile
    # accumulation path, plus the host-side Hungarian assignment.
    matcher = HungarianMatcherPallas(1.0, 1.0, 1.0, 1.0, hw_block=512)
    cost_split, indices = matcher(predicted_dict, target_dict)
    cost_split = np.asarray(jax.block_until_ready(cost_split))

    for name, c in (("default", cost_default), ("hw-split", cost_split)):
        assert np.all(np.isfinite(c)), name
        max_err = np.max(np.abs(c - ref))
        assert np.allclose(c, ref, rtol=5e-3, atol=5e-3), \
            f"{name}: cost matrix mismatch vs reference (max abs err {max_err})"
    assert all(idx.shape == (2, min(Q, E)) for idx in indices)

    print("KERNEL_OK")
</pallas_src>

<mosaic_0001>
module attributes {stable_mosaic.version = 11 : i64} {
  func.func @matcher_cost_kernel(%arg0: i32, %arg1: i32, %arg2: memref<1x16x1024xbf16, #tpu.memory_space<vmem>>, %arg3: memref<1x16x1024xbf16, #tpu.memory_space<vmem>>, %arg4: memref<1x16x1024xbf16, #tpu.memory_space<vmem>>, %arg5: memref<1x8x1024xf32, #tpu.memory_space<vmem>>, %arg6: memref<1x16x3xf32, #tpu.memory_space<vmem>>, %arg7: memref<1x2x8xf32, #tpu.memory_space<vmem>>, %arg8: memref<1x16x8xf32, #tpu.memory_space<vmem>>, %arg9: memref<1x24x1024xbf16, #tpu.memory_space<vmem>>, %arg10: memref<1x24x1024xbf16, #tpu.memory_space<vmem>>, %arg11: memref<1x24x8xf32, #tpu.memory_space<vmem>>, %arg12: memref<1x24x8xf32, #tpu.memory_space<vmem>>, %arg13: memref<1x16x1xf32, #tpu.memory_space<vmem>>, %arg14: memref<1x16x1xf32, #tpu.memory_space<vmem>>) attributes {dimension_semantics = [#tpu.dimension_semantics<parallel>, #tpu.dimension_semantics<arbitrary>], iteration_bounds = array<i64: 2, 1>, scalar_prefetch = 0 : i64, scratch_operands = 6 : i64, tpu.core_type = #tpu.core_type<tc>, window_params = [{transform_indices = @transform_0, window_bounds = array<i64: 1, 16, 1024>}, {transform_indices = @transform_1, window_bounds = array<i64: 1, 16, 1024>}, {transform_indices = @transform_2, window_bounds = array<i64: 1, 16, 1024>}, {transform_indices = @transform_3, window_bounds = array<i64: 1, 8, 1024>}, {transform_indices = @transform_4, window_bounds = array<i64: 1, 16, 3>}, {transform_indices = @transform_5, window_bounds = array<i64: 1, 2, 8>}, {transform_indices = @transform_6, window_bounds = array<i64: 1, 16, 8>}]} {
    %c0_i32 = arith.constant 0 : i32
    %0 = arith.cmpi eq, %arg1, %c0_i32 : i32
    %1 = arith.extui %0 : i1 to i32
    %c0_i32_0 = arith.constant 0 : i32
    %2 = arith.cmpi ne, %1, %c0_i32_0 : i32
    scf.if %2 {
      %cst_63 = arith.constant 0.000000e+00 : f32
      %67 = vector.broadcast %cst_63 : f32 to vector<1x24x8xf32>
      %c0_64 = arith.constant 0 : index
      %c0_65 = arith.constant 0 : index
      %c0_66 = arith.constant 0 : index
      %68 = vector.load %arg11[%c0_64, %c0_65, %c0_66] : memref<1x24x8xf32, #tpu.memory_space<vmem>>, vector<1x24x8xf32>
      tpu.vector_store %arg11[%c0_64, %c0_65, %c0_66], %67 {strides = array<i32>} : memref<1x24x8xf32, #tpu.memory_space<vmem>>, vector<1x24x8xf32>,
      %cst_67 = arith.constant 0.000000e+00 : f32
      %69 = vector.broadcast %cst_67 : f32 to vector<1x24x8xf32>
      %c0_68 = arith.constant 0 : index
      %c0_69 = arith.constant 0 : index
      %c0_70 = arith.constant 0 : index
      %70 = vector.load %arg12[%c0_68, %c0_69, %c0_70] : memref<1x24x8xf32, #tpu.memory_space<vmem>>, vector<1x24x8xf32>
      tpu.vector_store %arg12[%c0_68, %c0_69, %c0_70], %69 {strides = array<i32>} : memref<1x24x8xf32, #tpu.memory_space<vmem>>, vector<1x24x8xf32>,
      %cst_71 = arith.constant 0.000000e+00 : f32
      %71 = vector.broadcast %cst_71 : f32 to vector<1x16x1xf32>
      %c0_72 = arith.constant 0 : index
      %c0_73 = arith.constant 0 : index
      %c0_74 = arith.constant 0 : index
      %72 = vector.load %arg13[%c0_72, %c0_73, %c0_74] : memref<1x16x1xf32, #tpu.memory_space<vmem>>, vector<1x16x1xf32>
      tpu.vector_store %arg13[%c0_72, %c0_73, %c0_74], %71 {strides = array<i32>} : memref<1x16x1xf32, #tpu.memory_space<vmem>>, vector<1x16x1xf32>,
      %cst_75 = arith.constant 0.000000e+00 : f32
      %73 = vector.broadcast %cst_75 : f32 to vector<1x16x1xf32>
      %c0_76 = arith.constant 0 : index
      %c0_77 = arith.constant 0 : index
      %c0_78 = arith.constant 0 : index
      %74 = vector.load %arg14[%c0_76, %c0_77, %c0_78] : memref<1x16x1xf32, #tpu.memory_space<vmem>>, vector<1x16x1xf32>
      tpu.vector_store %arg14[%c0_76, %c0_77, %c0_78], %73 {strides = array<i32>} : memref<1x16x1xf32, #tpu.memory_space<vmem>>, vector<1x16x1xf32>,
      %75 = tpu.iota {dimensions = array<i32: 1>} : vector<1x8x1024xi32>
      %c0_i32_79 = arith.constant 0 : i32
      %76 = vector.broadcast %c0_i32_79 : i32 to vector<1x8x1024xi32>
      %77 = arith.cmpi eq, %75, %76 : vector<1x8x1024xi32>
      %78 = arith.extui %77 : vector<1x8x1024xi1> to vector<1x8x1024xi32>
      %79 = arith.sitofp %78 : vector<1x8x1024xi32> to vector<1x8x1024xf32>
      %80 = arith.truncf %79 : vector<1x8x1024xf32> to vector<1x8x1024xbf16>
      %c0_80 = arith.constant 0 : index
      %c16 = arith.constant 16 : index
      %c0_81 = arith.constant 0 : index
      %81 = vector.load %arg9[%c0_80, %c16, %c0_81] : memref<1x24x1024xbf16, #tpu.memory_space<vmem>>, vector<1x8x1024xbf16>
      tpu.vector_store %arg9[%c0_80, %c16, %c0_81], %80 {strides = array<i32>} : memref<1x24x1024xbf16, #tpu.memory_space<vmem>>, vector<1x8x1024xbf16>,
      %c0_82 = arith.constant 0 : index
      %c16_83 = arith.constant 16 : index
      %c0_84 = arith.constant 0 : index
      %82 = vector.load %arg10[%c0_82, %c16_83, %c0_84] : memref<1x24x1024xbf16, #tpu.memory_space<vmem>>, vector<1x8x1024xbf16>
      tpu.vector_store %arg10[%c0_82, %c16_83, %c0_84], %80 {strides = array<i32>} : memref<1x24x1024xbf16, #tpu.memory_space<vmem>>, vector<1x8x1024xbf16>,
    } else {
    }
    %c0 = arith.constant 0 : index
    %c0_1 = arith.constant 0 : index
    %c0_2 = arith.constant 0 : index
    %3 = vector.load %arg2[%c0, %c0_1, %c0_2] : memref<1x16x1024xbf16, #tpu.memory_space<vmem>>, vector<1x16x1024xbf16>
    %c0_3 = arith.constant 0 : index
    %c0_4 = arith.constant 0 : index
    %c0_5 = arith.constant 0 : index
    %4 = vector.load %arg3[%c0_3, %c0_4, %c0_5] : memref<1x16x1024xbf16, #tpu.memory_space<vmem>>, vector<1x16x1024xbf16>
    %c0_6 = arith.constant 0 : index
    %c0_7 = arith.constant 0 : index
    %c0_8 = arith.constant 0 : index
    %5 = vector.load %arg4[%c0_6, %c0_7, %c0_8] : memref<1x16x1024xbf16, #tpu.memory_space<vmem>>, vector<1x16x1024xbf16>
    %c0_9 = arith.constant 0 : index
    %c0_10 = arith.constant 0 : index
    %c0_11 = arith.constant 0 : index
    %6 = vector.load %arg5[%c0_9, %c0_10, %c0_11] : memref<1x8x1024xf32, #tpu.memory_space<vmem>>, vector<1x8x1024xf32>
    %cst = arith.constant 2.000000e+00 : bf16
    %7 = vector.broadcast %cst : bf16 to vector<1x16x1024xbf16>
    %8 = arith.cmpf oge, %5, %7 : vector<1x16x1024xbf16>
    %cst_12 = arith.constant 1.000000e+00 : bf16
    %9 = vector.broadcast %cst_12 : bf16 to vector<1x16x1024xbf16>
    %10 = arith.cmpf oeq, %5, %9 : vector<1x16x1024xbf16>
    %cst_13 = arith.constant 3.000000e+00 : bf16
    %11 = vector.broadcast %cst_13 : bf16 to vector<1x16x1024xbf16>
    %12 = arith.cmpf oeq, %5, %11 : vector<1x16x1024xbf16>
    %13 = arith.ori %10, %12 : vector<1x16x1024xi1>
    %cst_14 = arith.constant 0.000000e+00 : f32
    %14 = vector.broadcast %cst_14 : f32 to vector<1x8x1024xf32>
    %15 = arith.cmpf one, %6, %14 : vector<1x8x1024xf32>
    %16 = arith.extui %15 : vector<1x8x1024xi1> to vector<1x8x1024xi32>
    %17 = arith.sitofp %16 : vector<1x8x1024xi32> to vector<1x8x1024xf32>
    %18 = arith.truncf %17 : vector<1x8x1024xf32> to vector<1x8x1024xbf16>
    %cst_15 = arith.constant 0.000000e+00 : bf16
    %19 = vector.broadcast %cst_15 : bf16 to vector<1x16x1024xbf16>
    %20 = arith.select %13, %3, %19 : vector<1x16x1024xi1>, vector<1x16x1024xbf16>
    %c0_16 = arith.constant 0 : index
    %c0_17 = arith.constant 0 : index
    %c0_18 = arith.constant 0 : index
    %21 = vector.load %arg9[%c0_16, %c0_17, %c0_18] : memref<1x24x1024xbf16, #tpu.memory_space<vmem>>, vector<1x16x1024xbf16>
    tpu.vector_store %arg9[%c0_16, %c0_17, %c0_18], %20 {strides = array<i32>} : memref<1x24x1024xbf16, #tpu.memory_space<vmem>>, vector<1x16x1024xbf16>,
    %22 = arith.extf %4 : vector<1x16x1024xbf16> to vector<1x16x1024xf32>
    %23 = arith.negf %22 : vector<1x16x1024xf32>
    %24 = math.exp %23 : vector<1x16x1024xf32>
    %cst_19 = arith.constant 1.000000e+00 : f32
    %25 = vector.broadcast %cst_19 : f32 to vector<1x16x1024xf32>
    %26 = arith.addf %25, %24 : vector<1x16x1024xf32>
    %27 = arith.divf %25, %26 : vector<1x16x1024xf32>
    %cst_20 = arith.constant 0.000000e+00 : f32
    %28 = vector.broadcast %cst_20 : f32 to vector<1x16x1024xf32>
    %29 = arith.select %8, %27, %28 : vector<1x16x1024xi1>, vector<1x16x1024xf32>
    %30 = arith.truncf %29 : vector<1x16x1024xf32> to vector<1x16x1024xbf16>
    %c0_21 = arith.constant 0 : index
    %c0_22 = arith.constant 0 : index
    %c0_23 = arith.constant 0 : index
    %31 = vector.load %arg10[%c0_21, %c0_22, %c0_23] : memref<1x24x1024xbf16, #tpu.memory_space<vmem>>, vector<1x16x1024xbf16>
    tpu.vector_store %arg10[%c0_21, %c0_22, %c0_23], %30 {strides = array<i32>} : memref<1x24x1024xbf16, #tpu.memory_space<vmem>>, vector<1x16x1024xbf16>,
    %c0_24 = arith.constant 0 : index
    %c0_25 = arith.constant 0 : index
    %c0_26 = arith.constant 0 : index
    %32 = vector.load %arg11[%c0_24, %c0_25, %c0_26] : memref<1x24x8xf32, #tpu.memory_space<vmem>>, vector<1x24x8xf32>
    %c0_27 = arith.constant 0 : index
    %c0_28 = arith.constant 0 : index
    %c0_29 = arith.constant 0 : index
    %33 = vector.load %arg9[%c0_27, %c0_28, %c0_29] : memref<1x24x1024xbf16, #tpu.memory_space<vmem>>, vector<1x24x1024xbf16>
    "tpu.trace_start"() <{level = 10 : i32, message = "bqh,beh->bqe"}> : () -> ()
    %cst_30 = arith.constant dense<0.000000e+00> : vector<1x24x8xf32>
    %34 = tpu.matmul %33, %18, %cst_30 {dimension_numbers = #tpu.dot_dimension_numbers<[2], [2], [1], [1], [0, 0, 0, 1, 1, 1], [0], [0]>} : vector<1x24x1024xbf16>, vector<1x8x1024xbf16>, vector<1x24x8xf32> -> vector<1x24x8xf32>
    "tpu.trace_stop"() : () -> ()
    %35 = arith.addf %32, %34 : vector<1x24x8xf32>
    %c0_31 = arith.constant 0 : index
    %c0_32 = arith.constant 0 : index
    %c0_33 = arith.constant 0 : index
    %36 = vector.load %arg11[%c0_31, %c0_32, %c0_33] : memref<1x24x8xf32, #tpu.memory_space<vmem>>, vector<1x24x8xf32>
    tpu.vector_store %arg11[%c0_31, %c0_32, %c0_33], %35 {strides = array<i32>} : memref<1x24x8xf32, #tpu.memory_space<vmem>>, vector<1x24x8xf32>,
    %c0_34 = arith.constant 0 : index
    %c0_35 = arith.constant 0 : index
    %c0_36 = arith.constant 0 : index
    %37 = vector.load %arg12[%c0_34, %c0_35, %c0_36] : memref<1x24x8xf32, #tpu.memory_space<vmem>>, vector<1x24x8xf32>
    %c0_37 = arith.constant 0 : index
    %c0_38 = arith.constant 0 : index
    %c0_39 = arith.constant 0 : index
    %38 = vector.load %arg10[%c0_37, %c0_38, %c0_39] : memref<1x24x1024xbf16, #tpu.memory_space<vmem>>, vector<1x24x1024xbf16>
    %39 = arith.truncf %6 : vector<1x8x1024xf32> to vector<1x8x1024xbf16>
    "tpu.trace_start"() <{level = 10 : i32, message = "bqh,beh->bqe"}> : () -> ()
    %cst_40 = arith.constant dense<0.000000e+00> : vector<1x24x8xf32>
    %40 = tpu.matmul %38, %39, %cst_40 {dimension_numbers = #tpu.dot_dimension_numbers<[2], [2], [1], [1], [0, 0, 0, 1, 1, 1], [0], [0]>} : vector<1x24x1024xbf16>, vector<1x8x1024xbf16>, vector<1x24x8xf32> -> vector<1x24x8xf32>
    "tpu.trace_stop"() : () -> ()
    %41 = arith.addf %37, %40 : vector<1x24x8xf32>
    %c0_41 = arith.constant 0 : index
    %c0_42 = arith.constant 0 : index
    %c0_43 = arith.constant 0 : index
    %42 = vector.load %arg12[%c0_41, %c0_42, %c0_43] : memref<1x24x8xf32, #tpu.memory_space<vmem>>, vector<1x24x8xf32>
    tpu.vector_store %arg12[%c0_41, %c0_42, %c0_43], %41 {strides = array<i32>} : memref<1x24x8xf32, #tpu.memory_space<vmem>>, vector<1x24x8xf32>,
    %43 = arith.extf %3 : vector<1x16x1024xbf16> to vector<1x16x1024xf32>
    %cst_44 = arith.constant 0.000000e+00 : f32
    %44 = vector.broadcast %cst_44 : f32 to vector<1x16x1024xf32>
    %45 = arith.maximumf %43, %44 : vector<1x16x1024xf32>
    %46 = math.absf %43 : vector<1x16x1024xf32>
    %cst_45 = arith.constant 0.000000e+00 : f32
    %47 = vector.broadcast %cst_45 : f32 to vector<1x16x1024xf32>
    %48 = arith.subf %47, %46 : vector<1x16x1024xf32>
    %49 = math.exp %48 : vector<1x16x1024xf32>
    %50 = math.log1p %49 : vector<1x16x1024xf32>
    %51 = arith.addf %45, %50 : vector<1x16x1024xf32>
    %cst_46 = arith.constant 0.000000e+00 : f32
    %52 = vector.broadcast %cst_46 : f32 to vector<1x16x1024xf32>
    %53 = arith.select %13, %51, %52 : vector<1x16x1024xi1>, vector<1x16x1024xf32>
    %c0_47 = arith.constant 0 : index
    %c0_48 = arith.constant 0 : index
    %c0_49 = arith.constant 0 : index
    %54 = vector.load %arg13[%c0_47, %c0_48, %c0_49] : memref<1x16x1xf32, #tpu.memory_space<vmem>>, vector<1x16x1xf32>
    %cst_50 = arith.constant dense<0.000000e+00> : vector<1x16xf32>
    %55 = vector.multi_reduction <add>, %53, %cst_50 [2] : vector<1x16x1024xf32> to vector<1x16xf32>
    %56 = vector.shape_cast %55 : vector<1x16xf32> to vector<1x16x1xf32>
    %57 = arith.addf %54, %56 : vector<1x16x1xf32>
    %c0_51 = arith.constant 0 : index
    %c0_52 = arith.constant 0 : index
    %c0_53 = arith.constant 0 : index
    %58 = vector.load %arg13[%c0_51, %c0_52, %c0_53] : memref<1x16x1xf32, #tpu.memory_space<vmem>>, vector<1x16x1xf32>
    tpu.vector_store %arg13[%c0_51, %c0_52, %c0_53], %57 {strides = array<i32>} : memref<1x16x1xf32, #tpu.memory_space<vmem>>, vector<1x16x1xf32>,
    %c0_54 = arith.constant 0 : index
    %c0_55 = arith.constant 0 : index
    %c0_56 = arith.constant 0 : index
    %59 = vector.load %arg14[%c0_54, %c0_55, %c0_56] : memref<1x16x1xf32, #tpu.memory_space<vmem>>, vector<1x16x1xf32>
    %cst_57 = arith.constant dense<0.000000e+00> : vector<1x16xf32>
    %60 = vector.multi_reduction <add>, %29, %cst_57 [2] : vector<1x16x1024xf32> to vector<1x16xf32>
    %61 = vector.shape_cast %60 : vector<1x16xf32> to vector<1x16x1xf32>
    %62 = arith.addf %59, %61 : vector<1x16x1xf32>
    %c0_58 = arith.constant 0 : index
    %c0_59 = arith.constant 0 : index
    %c0_60 = arith.constant 0 : index
    %63 = vector.load %arg14[%c0_58, %c0_59, %c0_60] : memref<1x16x1xf32, #tpu.memory_space<vmem>>, vector<1x16x1xf32>
    tpu.vector_store %arg14[%c0_58, %c0_59, %c0_60], %62 {strides = array<i32>} : memref<1x16x1xf32, #tpu.memory_space<vmem>>, vector<1x16x1xf32>,
    %c0_i32_61 = arith.constant 0 : i32
    %64 = arith.cmpi eq, %arg1, %c0_i32_61 : i32
    %65 = arith.extui %64 : i1 to i32
    %c0_i32_62 = arith.constant 0 : i32
    %66 = arith.cmpi ne, %65, %c0_i32_62 : i32
    scf.if %66 {
      %c0_63 = arith.constant 0 : index
      %c0_64 = arith.constant 0 : index
      %c0_65 = arith.constant 0 : index
      %67 = vector.load %arg11[%c0_63, %c0_64, %c0_65] : memref<1x24x8xf32, #tpu.memory_space<vmem>>, vector<1x16x8xf32>
      %c0_66 = arith.constant 0 : index
      %c0_67 = arith.constant 0 : index
      %c0_68 = arith.constant 0 : index
      %68 = vector.load %arg12[%c0_66, %c0_67, %c0_68] : memref<1x24x8xf32, #tpu.memory_space<vmem>>, vector<1x16x8xf32>
      %c0_69 = arith.constant 0 : index
      %c16 = arith.constant 16 : index
      %c0_70 = arith.constant 0 : index
      %69 = vector.load %arg11[%c0_69, %c16, %c0_70] : memref<1x24x8xf32, #tpu.memory_space<vmem>>, vector<1x1x8xf32>
      %c0_71 = arith.constant 0 : index
      %c16_72 = arith.constant 16 : index
      %c0_73 = arith.constant 0 : index
      %70 = vector.load %arg12[%c0_71, %c16_72, %c0_73] : memref<1x24x8xf32, #tpu.memory_space<vmem>>, vector<1x1x8xf32>
      %c0_74 = arith.constant 0 : index
      %c0_75 = arith.constant 0 : index
      %c0_76 = arith.constant 0 : index
      %71 = vector.load %arg13[%c0_74, %c0_75, %c0_76] : memref<1x16x1xf32, #tpu.memory_space<vmem>>, vector<1x16x1xf32>
      %c0_77 = arith.constant 0 : index
      %c0_78 = arith.constant 0 : index
      %c0_79 = arith.constant 0 : index
      %72 = vector.load %arg14[%c0_77, %c0_78, %c0_79] : memref<1x16x1xf32, #tpu.memory_space<vmem>>, vector<1x16x1xf32>
      %cst_80 = arith.constant dense<0.000000e+00> : vector<1x1xf32>
      %73 = vector.multi_reduction <add>, %69, %cst_80 [2] : vector<1x1x8xf32> to vector<1x1xf32>
      %74 = vector.shape_cast %73 : vector<1x1xf32> to vector<1x1x1xf32>
      %cst_81 = arith.constant 1.000000e+00 : f32
      %75 = vector.broadcast %cst_81 : f32 to vector<1x1x1xf32>
      %76 = arith.maximumf %74, %75 : vector<1x1x1xf32>
      %77 = vector.broadcast %71 : vector<1x16x1xf32> to vector<1x16x8xf32>
      %78 = arith.subf %77, %67 : vector<1x16x8xf32>
      %79 = tpu.reciprocal %76 {approx = true} : vector<1x1x1xf32> -> vector<1x1x1xf32>
      %80 = vector.broadcast %79 : vector<1x1x1xf32> to vector<1x16x8xf32>
      %81 = arith.mulf %78, %80 : vector<1x16x8xf32>
      %cst_82 = arith.constant 2.000000e+00 : f32
      %82 = vector.broadcast %cst_82 : f32 to vector<1x16x8xf32>
      %83 = arith.mulf %82, %68 : vector<1x16x8xf32>
      %cst_83 = arith.constant 1.000000e+00 : f32
      %84 = vector.broadcast %cst_83 : f32 to vector<1x16x8xf32>
      %85 = arith.addf %83, %84 : vector<1x16x8xf32>
      %86 = vector.broadcast %72 : vector<1x16x1xf32> to vector<1x16x8xf32>
      %87 = vector.broadcast %70 : vector<1x1x8xf32> to vector<1x16x8xf32>
      %88 = arith.addf %86, %87 : vector<1x16x8xf32>
      %cst_84 = arith.constant 1.000000e+00 : f32
      %89 = vector.broadcast %cst_84 : f32 to vector<1x16x8xf32>
      %90 = arith.addf %88, %89 : vector<1x16x8xf32>
      %91 = tpu.reciprocal %90 {approx = true} : vector<1x16x8xf32> -> vector<1x16x8xf32>
      %92 = arith.mulf %85, %91 : vector<1x16x8xf32>
      %cst_85 = arith.constant 1.000000e+00 : f32
      %93 = vector.broadcast %cst_85 : f32 to vector<1x16x8xf32>
      %94 = arith.subf %93, %92 : vector<1x16x8xf32>
      %c0_86 = arith.constant 0 : index
      %c0_87 = arith.constant 0 : index
      %c0_88 = arith.constant 0 : index
      %95 = vector.load %arg6[%c0_86, %c0_87, %c0_88] : memref<1x16x3xf32, #tpu.memory_space<vmem>>, vector<1x16x3xf32>
      %96 = vector.extract_strided_slice %95 {offsets = [0, 0, 0], sizes = [1, 16, 1], strides = [1, 1, 1]} : vector<1x16x3xf32> to vector<1x16x1xf32>
      %cst_89 = arith.constant 0.000000e+00 : f32
      %97 = vector.broadcast %cst_89 : f32 to vector<1x16x1xf32>
      %98 = arith.subf %97, %96 : vector<1x16x1xf32>
      %cst_90 = arith.constant 0.000000e+00 : f32
      %99 = vector.broadcast %cst_90 : f32 to vector<1x16x1xf32>
      %100 = arith.maximumf %98, %99 : vector<1x16x1xf32>
      %101 = math.absf %98 : vector<1x16x1xf32>
      %cst_91 = arith.constant 0.000000e+00 : f32
      %102 = vector.broadcast %cst_91 : f32 to vector<1x16x1xf32>
      %103 = arith.subf %102, %101 : vector<1x16x1xf32>
      %104 = math.exp %103 : vector<1x16x1xf32>
      %105 = math.log1p %104 : vector<1x16x1xf32>
      %106 = arith.addf %100, %105 : vector<1x16x1xf32>
      %c0_92 = arith.constant 0 : index
      %c0_93 = arith.constant 0 : index
      %c0_94 = arith.constant 0 : index
      %107 = vector.load %arg7[%c0_92, %c0_93, %c0_94] : memref<1x2x8xf32, #tpu.memory_space<vmem>>, vector<1x2x8xf32>
      %108 = vector.extract_strided_slice %95 {offsets = [0, 0, 1], sizes = [1, 16, 1], strides = [1, 1, 1]} : vector<1x16x3xf32> to vector<1x16x1xf32>
      %109 = vector.extract_strided_slice %107 {offsets = [0, 0, 0], sizes = [1, 1, 8], strides = [1, 1, 1]} : vector<1x2x8xf32> to vector<1x1x8xf32>
      %110 = vector.broadcast %108 : vector<1x16x1xf32> to vector<1x16x8xf32>
      %111 = vector.broadcast %109 : vector<1x1x8xf32> to vector<1x16x8xf32>
      %112 = arith.subf %110, %111 : vector<1x16x8xf32>
      %113 = vector.extract_strided_slice %95 {offsets = [0, 0, 2], sizes = [1, 16, 1], strides = [1, 1, 1]} : vector<1x16x3xf32> to vector<1x16x1xf32>
      %114 = vector.extract_strided_slice %107 {offsets = [0, 1, 0], sizes = [1, 1, 8], strides = [1, 1, 1]} : vector<1x2x8xf32> to vector<1x1x8xf32>
      %115 = vector.broadcast %113 : vector<1x16x1xf32> to vector<1x16x8xf32>
      %116 = vector.broadcast %114 : vector<1x1x8xf32> to vector<1x16x8xf32>
      %117 = arith.subf %115, %116 : vector<1x16x8xf32>
      %118 = math.absf %112 : vector<1x16x8xf32>
      %119 = math.absf %117 : vector<1x16x8xf32>
      %cst_95 = arith.constant 1.000000e+00 : f32
      %120 = vector.broadcast %cst_95 : f32 to vector<1x16x8xf32>
      %121 = arith.cmpf ole, %118, %120 : vector<1x16x8xf32>
      %cst_96 = arith.constant 5.000000e-01 : f32
      %122 = vector.broadcast %cst_96 : f32 to vector<1x16x8xf32>
      %123 = arith.mulf %122, %112 : vector<1x16x8xf32>
      %124 = arith.mulf %123, %112 : vector<1x16x8xf32>
      %cst_97 = arith.constant 5.000000e-01 : f32
      %125 = vector.broadcast %cst_97 : f32 to vector<1x16x8xf32>
      %126 = arith.subf %118, %125 : vector<1x16x8xf32>
      %127 = arith.select %121, %124, %126 : vector<1x16x8xi1>, vector<1x16x8xf32>
      %cst_98 = arith.constant 1.000000e+00 : f32
      %128 = vector.broadcast %cst_98 : f32 to vector<1x16x8xf32>
      %129 = arith.cmpf ole, %119, %128 : vector<1x16x8xf32>
      %cst_99 = arith.constant 5.000000e-01 : f32
      %130 = vector.broadcast %cst_99 : f32 to vector<1x16x8xf32>
      %131 = arith.mulf %130, %117 : vector<1x16x8xf32>
      %132 = arith.mulf %131, %117 : vector<1x16x8xf32>
      %cst_100 = arith.constant 5.000000e-01 : f32
      %133 = vector.broadcast %cst_100 : f32 to vector<1x16x8xf32>
      %134 = arith.subf %119, %133 : vector<1x16x8xf32>
      %135 = arith.select %129, %132, %134 : vector<1x16x8xi1>, vector<1x16x8xf32>
      %136 = arith.addf %127, %135 : vector<1x16x8xf32>
      %cst_101 = arith.constant 5.000000e-01 : f32
      %137 = vector.broadcast %cst_101 : f32 to vector<1x16x8xf32>
      %138 = arith.mulf %137, %136 : vector<1x16x8xf32>
      %cst_102 = arith.constant 1.000000e+00 : f32
      %139 = vector.broadcast %cst_102 : f32 to vector<1x16x1xf32>
      %140 = arith.mulf %139, %106 : vector<1x16x1xf32>
      %cst_103 = arith.constant 1.000000e+00 : f32
      %141 = vector.broadcast %cst_103 : f32 to vector<1x16x8xf32>
      %142 = arith.mulf %141, %81 : vector<1x16x8xf32>
      %143 = vector.broadcast %140 : vector<1x16x1xf32> to vector<1x16x8xf32>
      %144 = arith.addf %143, %142 : vector<1x16x8xf32>
      %cst_104 = arith.constant 1.000000e+00 : f32
      %145 = vector.broadcast %cst_104 : f32 to vector<1x16x8xf32>
      %146 = arith.mulf %145, %94 : vector<1x16x8xf32>
      %147 = arith.addf %144, %146 : vector<1x16x8xf32>
      %cst_105 = arith.constant 1.000000e+00 : f32
      %148 = vector.broadcast %cst_105 : f32 to vector<1x16x8xf32>
      %149 = arith.mulf %148, %138 : vector<1x16x8xf32>
      %150 = arith.addf %147, %149 : vector<1x16x8xf32>
      %c0_106 = arith.constant 0 : index
      %c0_107 = arith.constant 0 : index
      %c0_108 = arith.constant 0 : index
      %151 = vector.load %arg8[%c0_106, %c0_107, %c0_108] : memref<1x16x8xf32, #tpu.memory_space<vmem>>, vector<1x16x8xf32>
      tpu.vector_store %arg8[%c0_106, %c0_107, %c0_108], %150 {strides = array<i32>} : memref<1x16x8xf32, #tpu.memory_space<vmem>>, vector<1x16x8xf32>,
    } else {
    }
    return
  }
  func.func @transform_0(%arg0: i32, %arg1: i32) -> (i32, i32, i32) {
    %c0_i32 = arith.constant 0 : i32
    %c0_i32_0 = arith.constant 0 : i32
    return %arg0, %c0_i32, %arg1 : i32, i32, i32
  }
  func.func @transform_1(%arg0: i32, %arg1: i32) -> (i32, i32, i32) {
    %c0_i32 = arith.constant 0 : i32
    %c0_i32_0 = arith.constant 0 : i32
    return %arg0, %c0_i32, %arg1 : i32, i32, i32
  }
  func.func @transform_2(%arg0: i32, %arg1: i32) -> (i32, i32, i32) {
    %c0_i32 = arith.constant 0 : i32
    %c0_i32_0 = arith.constant 0 : i32
    return %arg0, %c0_i32, %arg1 : i32, i32, i32
  }
  func.func @transform_3(%arg0: i32, %arg1: i32) -> (i32, i32, i32) {
    %c0_i32 = arith.constant 0 : i32
    %c0_i32_0 = arith.constant 0 : i32
    return %arg0, %c0_i32, %arg1 : i32, i32, i32
  }
  func.func @transform_4(%arg0: i32, %arg1: i32) -> (i32, i32, i32) {
    %c0_i32 = arith.constant 0 : i32
    %c0_i32_0 = arith.constant 0 : i32
    %c0_i32_1 = arith.constant 0 : i32
    return %arg0, %c0_i32, %c0_i32_0 : i32, i32, i32
  }
  func.func @transform_5(%arg0: i32, %arg1: i32) -> (i32, i32, i32) {
    %c0_i32 = arith.constant 0 : i32
    %c0_i32_0 = arith.constant 0 : i32
    %c0_i32_1 = arith.constant 0 : i32
    return %arg0, %c0_i32, %c0_i32_0 : i32, i32, i32
  }
  func.func @transform_6(%arg0: i32, %arg1: i32) -> (i32, i32, i32) {
    %c0_i32 = arith.constant 0 : i32
    %c0_i32_0 = arith.constant 0 : i32
    %c0_i32_1 = arith.constant 0 : i32
    return %arg0, %c0_i32, %c0_i32_0 : i32, i32, i32
  }
}

</mosaic_0001>

<llo_original>
// kernel: tpu_custom_call.1
$region0: #{tpu_custom_call.1}
  #allocation0 [shape = 'u32[]', space=smem, size = 0x4, offset = 0x4, fixed_abs, tag = 'smem constant byte address 0x4 - core index']
  #allocation1 [shape = 'u32[72,128]{1,0:T(1,128)}', space=vmem, size = 0x9000, scoped, tag = 'internal scratch']
  #allocation2 [shape = 'bf16[1,24,1024]{2,1,0:T(8,128)(2,1)}', space=vmem, size = 0xc000, scoped, tag = 'scratch operand']
  #allocation3 [shape = 'bf16[1,24,1024]{2,1,0:T(8,128)(2,1)}', space=vmem, size = 0xc000, scoped, tag = 'scratch operand']
  #allocation4 [shape = 'f32[1,24,8]{2,1,0:T(8,128)}', space=vmem, size = 0x3000, scoped, tag = 'scratch operand']
  #allocation5 [shape = 'f32[1,24,8]{2,1,0:T(8,128)}', space=vmem, size = 0x3000, scoped, tag = 'scratch operand']
  #allocation6 [shape = 'f32[1,16,1]{2,1,0:T(8,128)}', space=vmem, size = 0x2000, scoped, tag = 'scratch operand']
  #allocation7 [shape = 'f32[1,16,1]{2,1,0:T(8,128)}', space=vmem, size = 0x2000, scoped, tag = 'scratch operand']
  %s0 = inlined_call_operand.hbm [shape: bf16[2,16,1024], index: 0, kind: input, shape index: {}]
  %s1 = inlined_call_operand.hbm [shape: bf16[2,16,1024], index: 1, kind: input, shape index: {}]
  %s2 = inlined_call_operand.hbm [shape: bf16[2,16,1024], index: 2, kind: input, shape index: {}]
  %s3 = inlined_call_operand.hbm [shape: f32[2,8,1024], index: 3, kind: input, shape index: {}]
  %s4 = inlined_call_operand.vmem [shape: f32[2,16,3], index: 4, kind: input, shape index: {}]
  %s5 = inlined_call_operand.vmem [shape: f32[2,2,8], index: 5, kind: input, shape index: {}]
  %s6 = inlined_call_operand.vmem [shape: f32[2,16,8], index: 6, kind: output, shape index: {}]
  %s7 = sld [smem:[#allocation0]]
  $region81: #{tpu_custom_call.1} parent=0
    _
  %s9 = ssub.s32 1, %s7
  %s10 = scalar_select 0, %s9, %s7
  $region1: #{tpu_custom_call.1} parent=0
    #allocation8 [shape = 'u8[65536]{0}', space=vmem, size = 0x10000, scoped, tag = 'input window, operand 0']
    #allocation9 [shape = 's32[2]{0}', space=sflag, size = 0x8, scoped, tag = 'scoped memory for tpu_custom_call.1']
    #allocation10 [shape = 'u8[65536]{0}', space=vmem, size = 0x10000, scoped, tag = 'input window, operand 1']
    #allocation11 [shape = 's32[2]{0}', space=sflag, size = 0x8, scoped, tag = 'scoped memory for tpu_custom_call.1']
    #allocation12 [shape = 'u8[65536]{0}', space=vmem, size = 0x10000, scoped, tag = 'input window, operand 2']
    #allocation13 [shape = 'u8[65536]{0}', space=vmem, size = 0x10000, scoped, tag = 'input window, operand 3']
    #allocation14 [shape = 's32[2]{0}', space=sflag, size = 0x8, scoped, tag = 'scoped memory for tpu_custom_call.1']
    %11 = vsyncpa [#allocation9], 0
    %s12 = scalar_lea.sflag [#allocation9], 1
    %13 = vsyncpa %s12, 0
    %14 = vsyncpa [#allocation11], 0
    %s15 = scalar_lea.sflag [#allocation11], 1
    %16 = vsyncpa %s15, 0
    %17 = vsyncpa [#allocation14], 0
    %s18 = scalar_lea.sflag [#allocation14], 1
    %19 = vsyncpa %s18, 0
    loop: start=0, step=1, limit=4
    $region2: #{tpu_custom_call.1} parent=1 // loop_pre_header
      _
    $region3: #{tpu_custom_call.1} parent=1 // loop_header
      %s21 = sphi 0, %s25
      %p22 = scmp.ge.s32.totalorder %s21, 4
      %s28 = sphi 0, %s40
      %s29 = sphi 0, %s36
      %s30 = sphi 0, %s28
      %s31 = sphi 0, %s29
      %s32 = sphi 0, %s30
      %s33 = sphi 0, %s31
      %s45 = sphi 0, %s47
      %s48 = sphi 0, %s45
      %s49 = sphi 0, %s48
      %s65 = sphi 0, %s49
      %s73 = sphi 0, %s75
      %s76 = sphi 0, %s73
      %s77 = sphi 0, %s76
      %s93 = sphi 0, %s77
      %s101 = sphi 0, %s103
      %s104 = sphi 0, %s101
      %s105 = sphi 0, %s104
      %s121 = sphi 0, %s105
      %s129 = sphi 0, %s131
      %s132 = sphi 0, %s129
      %s133 = sphi 0, %s132
      %s149 = sphi 0, %s133
      %s155 = sphi 0, %s157
      %s158 = sphi 0, %s155
      %s159 = sphi 0, %s158
      %s175 = sphi 0, %s159
      %s181 = sphi 0, %s183
      %s184 = sphi 0, %s181
      %s185 = sphi 0, %s184
      %s201 = sphi 0, %s185
      %s207 = sphi 0, %s209
      %s210 = sphi 0, %s207
      %s211 = sphi 0, %s210
      %s227 = sphi 0, %s211
    $region4: #{tpu_custom_call.1} parent=1 // loop_header_branch
      %24 = sbr.rel (%p22) target = $region8
    $region5: #{tpu_custom_call.1} parent=1 // loop_body
      %s26 = ssub.s32 %s21, 1
      %s27 = ssub.s32 %s21, 2
      %s34 = sadd.s32 1, %s29
      %p35 = scmp.ge.s32.totalorder %s34, 1
      %s36 = scalar_select %p35, 0, %s34
      %s37 = sadd.s32 1, %s28
      %s38 = scalar_select %p35, %s37, %s28
      %p39 = scmp.ge.s32.totalorder %s38, 2
      %s40 = scalar_select %p39, 0, %s38
      %s41 = ssub.s32 %s28, %s40
      %s42 = ssub.s32 %s29, %s36
      %s43 = sor.u32 %s41, %s42
      %p44 = scmp.eq.s32.totalorder %s43, 0
      %s46 = sadd.s32 %s45, 1
      %s47 = scalar_select %p44, %s45, %s46
      %p50 = pneg %p44
      %p51 = scmp.eq.s32.totalorder %s21, 1
      %p52 = por %p50, %p51
      %p53 = scmp.ne.s32.totalorder %s45, %s48
      %p54 = scmp.eq.s32.totalorder %s21, 0
      %p55 = por %p53, %p54
      %p56 = scmp.ne.s32.totalorder %s45, %s48
      %p57 = scmp.eq.s32.totalorder %s26, 1
      %p58 = por %p56, %p57
      %p59 = scmp.ne.s32.totalorder %s48, %s49
      %p60 = scmp.eq.s32.totalorder %s26, 0
      %p61 = por %p59, %p60
      %p62 = scmp.ne.s32.totalorder %s48, %s49
      %p63 = scmp.eq.s32.totalorder %s27, 1
      %p64 = por %p62, %p63
      %p66 = scmp.ne.s32.totalorder %s49, %s65
      %p67 = scmp.eq.s32.totalorder %s27, 0
      %p68 = por %p66, %p67
      %s69 = ssub.s32 %s28, %s40
      %s70 = ssub.s32 %s29, %s36
      %s71 = sor.u32 %s69, %s70
      %p72 = scmp.eq.s32.totalorder %s71, 0
      %s74 = sadd.s32 %s73, 1
      %s75 = scalar_select %p72, %s73, %s74
      %p78 = pneg %p72
      %p79 = scmp.eq.s32.totalorder %s21, 1
      %p80 = por %p78, %p79
      %p81 = scmp.ne.s32.totalorder %s73, %s76
      %p82 = scmp.eq.s32.totalorder %s21, 0
      %p83 = por %p81, %p82
      %p84 = scmp.ne.s32.totalorder %s73, %s76
      %p85 = scmp.eq.s32.totalorder %s26, 1
      %p86 = por %p84, %p85
      %p87 = scmp.ne.s32.totalorder %s76, %s77
      %p88 = scmp.eq.s32.totalorder %s26, 0
      %p89 = por %p87, %p88
      %p90 = scmp.ne.s32.totalorder %s76, %s77
      %p91 = scmp.eq.s32.totalorder %s27, 1
      %p92 = por %p90, %p91
      %p94 = scmp.ne.s32.totalorder %s77, %s93
      %p95 = scmp.eq.s32.totalorder %s27, 0
      %p96 = por %p94, %p95
      %s97 = ssub.s32 %s28, %s40
      %s98 = ssub.s32 %s29, %s36
      %s99 = sor.u32 %s97, %s98
      %p100 = scmp.eq.s32.totalorder %s99, 0
      %s102 = sadd.s32 %s101, 1
      %s103 = scalar_select %p100, %s101, %s102
      %p106 = pneg %p100
      %p107 = scmp.eq.s32.totalorder %s21, 1
      %p108 = por %p106, %p107
      %p109 = scmp.ne.s32.totalorder %s101, %s104
      %p110 = scmp.eq.s32.totalorder %s21, 0
      %p111 = por %p109, %p110
      %p112 = scmp.ne.s32.totalorder %s101, %s104
      %p113 = scmp.eq.s32.totalorder %s26, 1
      %p114 = por %p112, %p113
      %p115 = scmp.ne.s32.totalorder %s104, %s105
      %p116 = scmp.eq.s32.totalorder %s26, 0
      %p117 = por %p115, %p116
      %p118 = scmp.ne.s32.totalorder %s104, %s105
      %p119 = scmp.eq.s32.totalorder %s27, 1
      %p120 = por %p118, %p119
      %p122 = scmp.ne.s32.totalorder %s105, %s121
      %p123 = scmp.eq.s32.totalorder %s27, 0
      %p124 = por %p122, %p123
      %s125 = ssub.s32 %s28, %s40
      %s126 = ssub.s32 %s29, %s36
      %s127 = sor.u32 %s125, %s126
      %p128 = scmp.eq.s32.totalorder %s127, 0
      %s130 = sadd.s32 %s129, 1
      %s131 = scalar_select %p128, %s129, %s130
      %p134 = pneg %p128
      %p135 = scmp.eq.s32.totalorder %s21, 1
      %p136 = por %p134, %p135
      %p137 = scmp.ne.s32.totalorder %s129, %s132
      %p138 = scmp.eq.s32.totalorder %s21, 0
      %p139 = por %p137, %p138
      %p140 = scmp.ne.s32.totalorder %s129, %s132
      %p141 = scmp.eq.s32.totalorder %s26, 1
      %p142 = por %p140, %p141
      %p143 = scmp.ne.s32.totalorder %s132, %s133
      %p144 = scmp.eq.s32.totalorder %s26, 0
      %p145 = por %p143, %p144
      %p146 = scmp.ne.s32.totalorder %s132, %s133
      %p147 = scmp.eq.s32.totalorder %s27, 1
      %p148 = por %p146, %p147
      %p150 = scmp.ne.s32.totalorder %s133, %s149
      %p151 = scmp.eq.s32.totalorder %s27, 0
      %p152 = por %p150, %p151
      %s153 = ssub.s32 %s28, %s40
      %p154 = scmp.eq.s32.totalorder %s153, 0
      %s156 = sadd.s32 %s155, 1
      %s157 = scalar_select %p154, %s155, %s156
      %p160 = pneg %p154
      %p161 = scmp.eq.s32.totalorder %s21, 1
      %p162 = por %p160, %p161
      %p163 = scmp.ne.s32.totalorder %s155, %s158
      %p164 = scmp.eq.s32.totalorder %s21, 0
      %p165 = por %p163, %p164
      %p166 = scmp.ne.s32.totalorder %s155, %s158
      %p167 = scmp.eq.s32.totalorder %s26, 1
      %p168 = por %p166, %p167
      %p169 = scmp.ne.s32.totalorder %s158, %s159
      %p170 = scmp.eq.s32.totalorder %s26, 0
      %p171 = por %p169, %p170
      %p172 = scmp.ne.s32.totalorder %s158, %s159
      %p173 = scmp.eq.s32.totalorder %s27, 1
      %p174 = por %p172, %p173
      %p176 = scmp.ne.s32.totalorder %s159, %s175
      %p177 = scmp.eq.s32.totalorder %s27, 0
      %p178 = por %p176, %p177
      %s179 = ssub.s32 %s28, %s40
      %p180 = scmp.eq.s32.totalorder %s179, 0
      %s182 = sadd.s32 %s181, 1
      %s183 = scalar_select %p180, %s181, %s182
      %p186 = pneg %p180
      %p187 = scmp.eq.s32.totalorder %s21, 1
      %p188 = por %p186, %p187
      %p189 = scmp.ne.s32.totalorder %s181, %s184
      %p190 = scmp.eq.s32.totalorder %s21, 0
      %p191 = por %p189, %p190
      %p192 = scmp.ne.s32.totalorder %s181, %s184
      %p193 = scmp.eq.s32.totalorder %s26, 1
      %p194 = por %p192, %p193
      %p195 = scmp.ne.s32.totalorder %s184, %s185
      %p196 = scmp.eq.s32.totalorder %s26, 0
      %p197 = por %p195, %p196
      %p198 = scmp.ne.s32.totalorder %s184, %s185
      %p199 = scmp.eq.s32.totalorder %s27, 1
      %p200 = por %p198, %p199
      %p202 = scmp.ne.s32.totalorder %s185, %s201
      %p203 = scmp.eq.s32.totalorder %s27, 0
      %p204 = por %p202, %p203
      %s205 = ssub.s32 %s28, %s40
      %p206 = scmp.eq.s32.totalorder %s205, 0
      %s208 = sadd.s32 %s207, 1
      %s209 = scalar_select %p206, %s207, %s208
      %p212 = pneg %p206
      %p213 = scmp.eq.s32.totalorder %s21, 1
      %p214 = por %p212, %p213
      %p215 = scmp.ne.s32.totalorder %s207, %s210
      %p216 = scmp.eq.s32.totalorder %s21, 0
      %p217 = por %p215, %p216
      %p218 = scmp.ne.s32.totalorder %s207, %s210
      %p219 = scmp.eq.s32.totalorder %s26, 1
      %p220 = por %p218, %p219
      %p221 = scmp.ne.s32.totalorder %s210, %s211
      %p222 = scmp.eq.s32.totalorder %s26, 0
      %p223 = por %p221, %p222
      %p224 = scmp.ne.s32.totalorder %s210, %s211
      %p225 = scmp.eq.s32.totalorder %s27, 1
      %p226 = por %p224, %p225
      %p228 = scmp.ne.s32.totalorder %s211, %s227
      %p229 = scmp.eq.s32.totalorder %s27, 0
      %p230 = por %p228, %p229
      %p231 = scmp.le.s32.totalorder 1, %s21
      %p232 = scmp.lt.s32.totalorder %s21, 3
      %p233 = pnand %p231, %p232
      %p234 = pneg %p233
      // Predicated region
      $region9: #{tpu_custom_call.1} parent=5 // pred_check
        _
      $region10: #{tpu_custom_call.1} parent=5 // pred_check_branch
        %236 = sbr.rel (%p233) target = $region12
      $region11: #{tpu_custom_call.1} parent=5 // pred_region
        %s237 = ssub.s32 %s21, 1
      $region12: #{tpu_custom_call.1} parent=5 // pred_fallthru
        _
      %p238 = scmp.lt.s32.totalorder %s21, 2
      // Predicated region
      $region13: #{tpu_custom_call.1} parent=5 // pred_check
        %p239 = pneg %p238
      $region14: #{tpu_custom_call.1} parent=5 // pred_check_branch
        %241 = sbr.rel (%p239) target = $region16
      $region15: #{tpu_custom_call.1} parent=5 // pred_region
        // Predicated region
        $region17: #{tpu_custom_call.1} parent=15 // pred_check
          %p242 = pneg %p55
        $region18: #{tpu_custom_call.1} parent=15 // pred_check_branch
          %244 = sbr.rel (%p242) target = $region20
        $region19: #{tpu_custom_call.1} parent=15 // pred_region
          %s245 = sand.u32 %s45, 1
          %s246 = scalar_lea.sflag [#allocation9], %s245
          %s247 = sand.u32 %s45, 1
          %s248 = smul.addr %s247, 64
          %s249 = scalar_lea.vmem [#allocation8], %s248
          %s250 = smul.u32 8, %s29
          %252 = vsyncadd %s246, 0
          %s253 = smul.addr %s28, 16
          %s254 = sadd.s32 %s250, %s253
          %s255 = smul.addr %s254, 4
          %s256 = scalar_lea.hbm %s0, %s255
          %s257 = sshll.u32 %s256, 4
          %s258 = int_to_ptr.hbm [resolvable:$true] %s257
          %s259 = sshll.u32 %s249, 4
          %s260 = int_to_ptr.vmem [resolvable:$true] %s259
          %265 = dma.hbm_to_vmem [thread:$0]  %s258, 1024, %s260, %s246, 512, 512, 32
        $region20: #{tpu_custom_call.1} parent=15 // pred_fallthru
          _
        // Predicated region
        $region21: #{tpu_custom_call.1} parent=15 // pred_check
          %p266 = pneg %p83
        $region22: #{tpu_custom_call.1} parent=15 // pred_check_branch
          %268 = sbr.rel (%p266) target = $region24
        $region23: #{tpu_custom_call.1} parent=15 // pred_region
          %s269 = sand.u32 %s21, 1
          %s270 = scalar_lea.sflag [#allocation11], %s269
          %s271 = sand.u32 %s73, 1
          %s272 = smul.addr %s271, 64
          %s273 = scalar_lea.vmem [#allocation10], %s272
          %s274 = smul.u32 8, %s29
          %276 = vsyncadd %s270, 0
          %s277 = smul.addr %s28, 16
          %s278 = sadd.s32 %s274, %s277
          %s279 = smul.addr %s278, 4
          %s280 = scalar_lea.hbm %s1, %s279
          %s281 = sshll.u32 %s280, 4
          %s282 = int_to_ptr.hbm [resolvable:$true] %s281
          %s283 = sshll.u32 %s273, 4
          %s284 = int_to_ptr.vmem [resolvable:$true] %s283
          %289 = dma.hbm_to_vmem [thread:$0]  %s282, 1024, %s284, %s270, 512, 512, 32
        $region24: #{tpu_custom_call.1} parent=15 // pred_fallthru
          _
        // Predicated region
        $region25: #{tpu_custom_call.1} parent=15 // pred_check
          %p290 = pneg %p111
        $region26: #{tpu_custom_call.1} parent=15 // pred_check_branch
          %292 = sbr.rel (%p290) target = $region28
        $region27: #{tpu_custom_call.1} parent=15 // pred_region
          %s293 = sand.u32 %s21, 1
          %s294 = scalar_lea.sflag [#allocation11], %s293
          %s295 = sand.u32 %s101, 1
          %s296 = smul.addr %s295, 64
          %s297 = scalar_lea.vmem [#allocation12], %s296
          %s298 = smul.u32 8, %s29
          %300 = vsyncadd %s294, 0
          %s301 = smul.addr %s28, 16
          %s302 = sadd.s32 %s298, %s301
          %s303 = smul.addr %s302, 4
          %s304 = scalar_lea.hbm %s2, %s303
          %s305 = sshll.u32 %s304, 4
          %s306 = int_to_ptr.hbm [resolvable:$true] %s305
          %s307 = sshll.u32 %s297, 4
          %s308 = int_to_ptr.vmem [resolvable:$true] %s307
          %313 = dma.hbm_to_vmem [thread:$0]  %s306, 1024, %s308, %s294, 512, 512, 32
        $region28: #{tpu_custom_call.1} parent=15 // pred_fallthru
          _
        // Predicated region
        $region29: #{tpu_custom_call.1} parent=15 // pred_check
          %p314 = pneg %p139
        $region30: #{tpu_custom_call.1} parent=15 // pred_check_branch
          %316 = sbr.rel (%p314) target = $region32
        $region31: #{tpu_custom_call.1} parent=15 // pred_region
          %s317 = sand.u32 %s129, 1
          %s318 = scalar_lea.sflag [#allocation14], %s317
          %s319 = sand.u32 %s129, 1
          %s320 = smul.addr %s319, 64
          %s321 = scalar_lea.vmem [#allocation13], %s320
          %s322 = smul.u32 8, %s29
          %324 = vsyncadd %s318, 0
          %s325 = smul.addr %s28, 8
          %s326 = sadd.s32 %s322, %s325
          %s327 = smul.addr %s326, 8
          %s328 = scalar_lea.hbm %s3, %s327
          %s330 = sshll.u32 %s328, 4
          %s331 = int_to_ptr.hbm [resolvable:$true] %s330
          %s332 = sshll.u32 %s321, 4
          %s333 = int_to_ptr.vmem [resolvable:$true] %s332
          %335 = dma.hbm_to_vmem [thread:$0]  %s331, 1024, %s333, %s318
        $region32: #{tpu_custom_call.1} parent=15 // pred_fallthru
          _
        // Predicated region
        $region33: #{tpu_custom_call.1} parent=15 // pred_check
          %p336 = pneg %p165
        $region34: #{tpu_custom_call.1} parent=15 // pred_check_branch
          %338 = sbr.rel (%p336) target = $region36
        $region35: #{tpu_custom_call.1} parent=15 // pred_region
          %p339 = scmp.lt.s32.totalorder %s28, 1
          %s340 = scalar_select %p339, %s28, 1
          %s341 = smul.addr %s340, 2
          %s342 = smul.addr %s341, 8
          %s343 = scalar_lea.vmem %s4, %s342
        $region36: #{tpu_custom_call.1} parent=15 // pred_fallthru
          _
        // Predicated region
        $region37: #{tpu_custom_call.1} parent=15 // pred_check
          %p344 = pneg %p191
        $region38: #{tpu_custom_call.1} parent=15 // pred_check_branch
          %346 = sbr.rel (%p344) target = $region40
        $region39: #{tpu_custom_call.1} parent=15 // pred_region
          %p347 = scmp.lt.s32.totalorder %s28, 1
          %s348 = scalar_select %p347, %s28, 1
          %s349 = smul.addr %s348, 2
          %s350 = scalar_lea.vmem %s5, %s349
        $region40: #{tpu_custom_call.1} parent=15 // pred_fallthru
          _
      $region16: #{tpu_custom_call.1} parent=5 // pred_fallthru
        _
      %p351 = scmp.le.s32.totalorder 1, %s21
      %p352 = scmp.lt.s32.totalorder %s21, 3
      %p353 = pnand %p351, %p352
      %p354 = pneg %p353
      // Predicated region
      $region41: #{tpu_custom_call.1} parent=5 // pred_check
        _
      $region42: #{tpu_custom_call.1} parent=5 // pred_check_branch
        %356 = sbr.rel (%p353) target = $region44
      $region43: #{tpu_custom_call.1} parent=5 // pred_region
        %s357 = ssub.s32 %s21, 1
        %s358 = sand.u32 %s48, 1
        %s359 = scalar_lea.sflag [#allocation9], %s358
        %s360 = sand.u32 %s48, 1
        %s361 = smul.addr %s360, 64
        %s362 = scalar_lea.vmem [#allocation8], %s361
        // Predicated region
        $region45: #{tpu_custom_call.1} parent=43 // pred_check
          %p363 = pneg %p61
        $region46: #{tpu_custom_call.1} parent=43 // pred_check_branch
          %365 = sbr.rel (%p363) target = $region48
        $region47: #{tpu_custom_call.1} parent=43 // pred_region
          %367 = dma.done %s359, 1024
        $region48: #{tpu_custom_call.1} parent=43 // pred_fallthru
          _
        %s368 = sand.u32 %s26, 1
        %s369 = scalar_lea.sflag [#allocation11], %s368
        %s370 = sand.u32 %s76, 1
        %s371 = smul.addr %s370, 64
        %s372 = scalar_lea.vmem [#allocation10], %s371
        // Predicated region
        $region49: #{tpu_custom_call.1} parent=43 // pred_check
          %p373 = pneg %p89
        $region50: #{tpu_custom_call.1} parent=43 // pred_check_branch
          %375 = sbr.rel (%p373) target = $region52
        $region51: #{tpu_custom_call.1} parent=43 // pred_region
          %377 = dma.done %s369, 1024
        $region52: #{tpu_custom_call.1} parent=43 // pred_fallthru
          _
        %s378 = sand.u32 %s26, 1
        %s379 = scalar_lea.sflag [#allocation11], %s378
        %s380 = sand.u32 %s104, 1
        %s381 = smul.addr %s380, 64
        %s382 = scalar_lea.vmem [#allocation12], %s381
        // Predicated region
        $region53: #{tpu_custom_call.1} parent=43 // pred_check
          %p383 = pneg %p117
        $region54: #{tpu_custom_call.1} parent=43 // pred_check_branch
          %385 = sbr.rel (%p383) target = $region56
        $region55: #{tpu_custom_call.1} parent=43 // pred_region
          %387 = dma.done %s379, 1024
        $region56: #{tpu_custom_call.1} parent=43 // pred_fallthru
          _
        %s388 = sand.u32 %s132, 1
        %s389 = scalar_lea.sflag [#allocation14], %s388
        %s390 = sand.u32 %s132, 1
        %s391 = smul.addr %s390, 64
        %s392 = scalar_lea.vmem [#allocation13], %s391
        // Predicated region
        $region57: #{tpu_custom_call.1} parent=43 // pred_check
          %p393 = pneg %p145
        $region58: #{tpu_custom_call.1} parent=43 // pred_check_branch
          %395 = sbr.rel (%p393) target = $region60
        $region59: #{tpu_custom_call.1} parent=43 // pred_region
          %397 = dma.done %s389, 1024
        $region60: #{tpu_custom_call.1} parent=43 // pred_fallthru
          _
        %s398 = sand.u32 %s48, 1
        %s399 = scalar_lea.sflag [#allocation9], %s398
        %s400 = sand.u32 %s48, 1
        %s401 = smul.addr %s400, 64
        %s402 = scalar_lea.vmem [#allocation8], %s401
        %p403 = pneg %p61
        %p404 = pneg %p58
        %s405 = sand.u32 %s26, 1
        %s406 = scalar_lea.sflag [#allocation11], %s405
        %s407 = sand.u32 %s76, 1
        %s408 = smul.addr %s407, 64
        %s409 = scalar_lea.vmem [#allocation10], %s408
        %p410 = pneg %p89
        %p411 = pneg %p86
        %s412 = sand.u32 %s26, 1
        %s413 = scalar_lea.sflag [#allocation11], %s412
        %s414 = sand.u32 %s104, 1
        %s415 = smul.addr %s414, 64
        %s416 = scalar_lea.vmem [#allocation12], %s415
        %p417 = pneg %p117
        %p418 = pneg %p114
        %s419 = sand.u32 %s132, 1
        %s420 = scalar_lea.sflag [#allocation14], %s419
        %s421 = sand.u32 %s132, 1
        %s422 = smul.addr %s421, 64
        %s423 = scalar_lea.vmem [#allocation13], %s422
        %p424 = pneg %p145
        %p425 = pneg %p142
        %p426 = scmp.lt.s32.totalorder %s30, 1
        %s427 = scalar_select %p426, %s30, 1
        %s428 = smul.addr %s427, 2
        %s429 = smul.addr %s428, 8
        %s430 = scalar_lea.vmem %s4, %s429
        %p431 = pneg %p171
        %p432 = pneg %p168
        %p433 = scmp.lt.s32.totalorder %s30, 1
        %s434 = scalar_select %p433, %s30, 1
        %s435 = smul.addr %s434, 2
        %s436 = scalar_lea.vmem %s5, %s435
        %p437 = pneg %p197
        %p438 = pneg %p194
        %p439 = pneg %p223
        %p440 = pneg %p220
        %p441 = scmp.lt.s32.totalorder %s30, 1
        %s442 = scalar_select %p441, %s30, 1
        %s443 = smul.addr %s442, 2
        %s444 = smul.addr %s443, 8
        %s445 = scalar_lea.vmem %s6, %s444
        %s446 = smul.u32 8, %s31
        %s447 = smul.u32 8, %s31
        %s448 = smul.u32 8, %s31
        %s449 = smul.u32 8, %s31
        %p450 = scmp.lt.s32.totalorder %s30, 1
        %s451 = scalar_select %p450, %s30, 1
        %s452 = smul.addr %s451, 2
        %s453 = smul.addr %s452, 8
        %s454 = scalar_lea.vmem %s4, %s453
        %p455 = scmp.lt.s32.totalorder %s30, 1
        %s456 = scalar_select %p455, %s30, 1
        %s457 = smul.addr %s456, 2
        %s458 = scalar_lea.vmem %s5, %s457
        %p459 = scmp.lt.s32.totalorder %s30, 1
        %s460 = scalar_select %p459, %s30, 1
        %s461 = smul.addr %s460, 2
        %s462 = smul.addr %s461, 8
        %s463 = scalar_lea.vmem %s6, %s462
        %p465 = scmp.eq.s32.totalorder %s31, 0
        // Predicated region
        $region61: #{tpu_custom_call.1} parent=43 // pred_check
          %p466 = pneg %p465
        $region62: #{tpu_custom_call.1} parent=43 // pred_check_branch
          %468 = sbr.rel (%p466) target = $region64
        $region63: #{tpu_custom_call.1} parent=43 // pred_region
          %vm469 = vcmask 64512
          %470 = vst.msk [vmem:[#allocation4] sm:$0xff] %vm469, 0.0
          %471 = vst.msk [vmem:[#allocation4 + $0x8] sm:$0xff] %vm469, 0.0
          %472 = vst.msk [vmem:[#allocation4 + $0x10] sm:$0xff] %vm469, 0.0
          %473 = vst.msk [vmem:[#allocation5] sm:$0xff] %vm469, 0.0
          %474 = vst.msk [vmem:[#allocation5 + $0x8] sm:$0xff] %vm469, 0.0
          %475 = vst.msk [vmem:[#allocation5 + $0x10] sm:$0xff] %vm469, 0.0
          %vm476 = vcmask 7168
          %477 = vst.msk [vmem:[#allocation6] sm:$0xff] %vm476, 0.0
          %478 = vst.msk [vmem:[#allocation6 + $0x8] sm:$0xff] %vm476, 0.0
          %479 = vst.msk [vmem:[#allocation7] sm:$0xff] %vm476, 0.0
          %480 = vst.msk [vmem:[#allocation7 + $0x8] sm:$0xff] %vm476, 0.0
          %v481 = vlaneseq
          %v482 = vshrl.u32 %v481, 7
          %vm483 = vcmp.eq.s32.totalorder %v482, 0
          %v484 = vsel %vm483, 1, 0
          %v485 = vcvt.s32.f32 %v484
          %v486 = vpack.c.bf16 %v485, %v485
          %487 = vst [vmem:[#allocation2 + $0x40] sm:$0xff] %v486
          %488 = vst [vmem:[#allocation2 + $0x48] sm:$0xff] %v486
          %489 = vst [vmem:[#allocation2 + $0x50] sm:$0xff] %v486
          %490 = vst [vmem:[#allocation2 + $0x58] sm:$0xff] %v486
          %491 = vst [vmem:[#allocation3 + $0x40] sm:$0xff] %v486
          %492 = vst [vmem:[#allocation3 + $0x48] sm:$0xff] %v486
          %493 = vst [vmem:[#allocation3 + $0x50] sm:$0xff] %v486
          %494 = vst [vmem:[#allocation3 + $0x58] sm:$0xff] %v486
        $region64: #{tpu_custom_call.1} parent=43 // pred_fallthru
          _
        %v495 = vld [vmem:[%s362] sm:$0xff]
        %v496 = vld [vmem:[%s362 + $0x8] sm:$0xff]
        %v497 = vld [vmem:[%s362 + $0x10] sm:$0xff]
        %v498 = vld [vmem:[%s362 + $0x18] sm:$0xff]
        %v499 = vld [vmem:[%s362 + $0x20] sm:$0xff]
        %v500 = vld [vmem:[%s362 + $0x28] sm:$0xff]
        %v501 = vld [vmem:[%s362 + $0x30] sm:$0xff]
        %v502 = vld [vmem:[%s362 + $0x38] sm:$0xff]
        %v503 = vld [vmem:[%s372] sm:$0xff]
        %v504 = vld [vmem:[%s372 + $0x8] sm:$0xff]
        %v505 = vld [vmem:[%s372 + $0x10] sm:$0xff]
        %v506 = vld [vmem:[%s372 + $0x18] sm:$0xff]
        %v507 = vld [vmem:[%s372 + $0x20] sm:$0xff]
        %v508 = vld [vmem:[%s372 + $0x28] sm:$0xff]
        %v509 = vld [vmem:[%s372 + $0x30] sm:$0xff]
        %v510 = vld [vmem:[%s372 + $0x38] sm:$0xff]
        %v511 = vld [vmem:[%s382] sm:$0xff]
        %v512 = vld [vmem:[%s382 + $0x8] sm:$0xff]
        %v513 = vld [vmem:[%s382 + $0x10] sm:$0xff]
        %v514 = vld [vmem:[%s382 + $0x18] sm:$0xff]
        %v515 = vld [vmem:[%s382 + $0x20] sm:$0xff]
        %v516 = vld [vmem:[%s382 + $0x28] sm:$0xff]
        %v517 = vld [vmem:[%s382 + $0x30] sm:$0xff]
        %v518 = vld [vmem:[%s382 + $0x38] sm:$0xff]
        %v519 = vld [vmem:[%s392] sm:$0xff]
        %v520 = vld [vmem:[%s392 + $0x8] sm:$0xff]
        %v521 = vld [vmem:[%s392 + $0x10] sm:$0xff]
        %v522 = vld [vmem:[%s392 + $0x18] sm:$0xff]
        %v523 = vld [vmem:[%s392 + $0x20] sm:$0xff]
        %v524 = vld [vmem:[%s392 + $0x28] sm:$0xff]
        %v525 = vld [vmem:[%s392 + $0x30] sm:$0xff]
        %v526 = vld [vmem:[%s392 + $0x38] sm:$0xff]
        %v527 = vunpack.c.l.bf16 %v511
        %v528 = vunpack.c.h.bf16 %v511
        %v529 = vunpack.c.l.bf16 %v512
        %v530 = vunpack.c.h.bf16 %v512
        %v531 = vunpack.c.l.bf16 %v513
        %v532 = vunpack.c.h.bf16 %v513
        %v533 = vunpack.c.l.bf16 %v514
        %v534 = vunpack.c.h.bf16 %v514
        %v535 = vunpack.c.l.bf16 %v515
        %v536 = vunpack.c.h.bf16 %v515
        %v537 = vunpack.c.l.bf16 %v516
        %v538 = vunpack.c.h.bf16 %v516
        %v539 = vunpack.c.l.bf16 %v517
        %v540 = vunpack.c.h.bf16 %v517
        %v541 = vunpack.c.l.bf16 %v518
        %v542 = vunpack.c.h.bf16 %v518
        %vm543 = vcmp.ge.f32.partialorder %v527, 2.0
        %vm544 = vcmp.ge.f32.partialorder %v528, 2.0
        %vm545 = vcmp.ge.f32.partialorder %v529, 2.0
        %vm546 = vcmp.ge.f32.partialorder %v530, 2.0
        %vm547 = vcmp.ge.f32.partialorder %v531, 2.0
        %vm548 = vcmp.ge.f32.partialorder %v532, 2.0
        %vm549 = vcmp.ge.f32.partialorder %v533, 2.0
        %vm550 = vcmp.ge.f32.partialorder %v534, 2.0
        %vm551 = vcmp.ge.f32.partialorder %v535, 2.0
        %vm552 = vcmp.ge.f32.partialorder %v536, 2.0
        %vm553 = vcmp.ge.f32.partialorder %v537, 2.0
        %vm554 = vcmp.ge.f32.partialorder %v538, 2.0
        %vm555 = vcmp.ge.f32.partialorder %v539, 2.0
        %vm556 = vcmp.ge.f32.partialorder %v540, 2.0
        %vm557 = vcmp.ge.f32.partialorder %v541, 2.0
        %vm558 = vcmp.ge.f32.partialorder %v542, 2.0
        %vm559 = vcmp.eq.f32.partialorder %v527, 1.0
        %vm560 = vcmp.eq.f32.partialorder %v528, 1.0
        %vm561 = vcmp.eq.f32.partialorder %v529, 1.0
        %vm562 = vcmp.eq.f32.partialorder %v530, 1.0
        %vm563 = vcmp.eq.f32.partialorder %v531, 1.0
        %vm564 = vcmp.eq.f32.partialorder %v532, 1.0
        %vm565 = vcmp.eq.f32.partialorder %v533, 1.0
        %vm566 = vcmp.eq.f32.partialorder %v534, 1.0
        %vm567 = vcmp.eq.f32.partialorder %v535, 1.0
        %vm568 = vcmp.eq.f32.partialorder %v536, 1.0
        %vm569 = vcmp.eq.f32.partialorder %v537, 1.0
        %vm570 = vcmp.eq.f32.partialorder %v538, 1.0
        %vm571 = vcmp.eq.f32.partialorder %v539, 1.0
        %vm572 = vcmp.eq.f32.partialorder %v540, 1.0
        %vm573 = vcmp.eq.f32.partialorder %v541, 1.0
        %vm574 = vcmp.eq.f32.partialorder %v542, 1.0
        %vm575 = vcmp.eq.f32.partialorder %v527, 3.0
        %vm576 = vcmp.eq.f32.partialorder %v528, 3.0
        %vm577 = vcmp.eq.f32.partialorder %v529, 3.0
        %vm578 = vcmp.eq.f32.partialorder %v530, 3.0
        %vm579 = vcmp.eq.f32.partialorder %v531, 3.0
        %vm580 = vcmp.eq.f32.partialorder %v532, 3.0
        %vm581 = vcmp.eq.f32.partialorder %v533, 3.0
        %vm582 = vcmp.eq.f32.partialorder %v534, 3.0
        %vm583 = vcmp.eq.f32.partialorder %v535, 3.0
        %vm584 = vcmp.eq.f32.partialorder %v536, 3.0
        %vm585 = vcmp.eq.f32.partialorder %v537, 3.0
        %vm586 = vcmp.eq.f32.partialorder %v538, 3.0
        %vm587 = vcmp.eq.f32.partialorder %v539, 3.0
        %vm588 = vcmp.eq.f32.partialorder %v540, 3.0
        %vm589 = vcmp.eq.f32.partialorder %v541, 3.0
        %vm590 = vcmp.eq.f32.partialorder %v542, 3.0
        %vm591 = vmor %vm559, %vm575
        %vm592 = vmor %vm560, %vm576
        %vm593 = vmor %vm561, %vm577
        %vm594 = vmor %vm562, %vm578
        %vm595 = vmor %vm563, %vm579
        %vm596 = vmor %vm564, %vm580
        %vm597 = vmor %vm565, %vm581
        %vm598 = vmor %vm566, %vm582
        %vm599 = vmor %vm567, %vm583
        %vm600 = vmor %vm568, %vm584
        %vm601 = vmor %vm569, %vm585
        %vm602 = vmor %vm570, %vm586
        %vm603 = vmor %vm571, %vm587
        %vm604 = vmor %vm572, %vm588
        %vm605 = vmor %vm573, %vm589
        %vm606 = vmor %vm574, %vm590
        %vm607 = vcmp.ne.f32.partialorder %v519, 0.0
        %vm608 = vcmp.ne.f32.partialorder %v520, 0.0
        %vm609 = vcmp.ne.f32.partialorder %v521, 0.0
        %vm610 = vcmp.ne.f32.partialorder %v522, 0.0
        %vm611 = vcmp.ne.f32.partialorder %v523, 0.0
        %vm612 = vcmp.ne.f32.partialorder %v524, 0.0
        %vm613 = vcmp.ne.f32.partialorder %v525, 0.0
        %vm614 = vcmp.ne.f32.partialorder %v526, 0.0
        %v615 = vsel %vm607, 1, 0
        %v616 = vsel %vm608, 1, 0
        %v617 = vsel %vm609, 1, 0
        %v618 = vsel %vm610, 1, 0
        %v619 = vsel %vm611, 1, 0
        %v620 = vsel %vm612, 1, 0
        %v621 = vsel %vm613, 1, 0
        %v622 = vsel %vm614, 1, 0
        %v623 = vcvt.s32.f32 %v615
        %v624 = vcvt.s32.f32 %v616
        %v625 = vcvt.s32.f32 %v617
        %v626 = vcvt.s32.f32 %v618
        %v627 = vcvt.s32.f32 %v619
        %v628 = vcvt.s32.f32 %v620
        %v629 = vcvt.s32.f32 %v621
        %v630 = vcvt.s32.f32 %v622
        %v631 = vpack.c.bf16 %v624, %v623
        %v632 = vpack.c.bf16 %v626, %v625
        %v633 = vpack.c.bf16 %v628, %v627
        %v634 = vpack.c.bf16 %v630, %v629
        %vm635 = vmpackc.low %vm592, %vm591
        %vm636 = vmpackc.low %vm594, %vm593
        %vm637 = vmpackc.low %vm596, %vm595
        %vm638 = vmpackc.low %vm598, %vm597
        %vm639 = vmpackc.low %vm600, %vm599
        %vm640 = vmpackc.low %vm602, %vm601
        %vm641 = vmpackc.low %vm604, %vm603
        %vm642 = vmpackc.low %vm606, %vm605
        %v643 = vsel %vm635, %v495, 0
        %v644 = vsel %vm636, %v496, 0
        %v645 = vsel %vm637, %v497, 0
        %v646 = vsel %vm638, %v498, 0
        %v647 = vsel %vm639, %v499, 0
        %v648 = vsel %vm640, %v500, 0
        %v649 = vsel %vm641, %v501, 0
        %v650 = vsel %vm642, %v502, 0
        %651 = vst [vmem:[#allocation2] sm:$0xff] %v643
        %652 = vst [vmem:[#allocation2 + $0x8] sm:$0xff] %v644
        %653 = vst [vmem:[#allocation2 + $0x10] sm:$0xff] %v645
        %654 = vst [vmem:[#allocation2 + $0x18] sm:$0xff] %v646
        %655 = vst [vmem:[#allocation2 + $0x20] sm:$0xff] %v647
        %656 = vst [vmem:[#allocation2 + $0x28] sm:$0xff] %v648
        %657 = vst [vmem:[#allocation2 + $0x30] sm:$0xff] %v649
        %658 = vst [vmem:[#allocation2 + $0x38] sm:$0xff] %v650
        %v659 = vunpack.c.l.bf16 %v503
        %v660 = vunpack.c.h.bf16 %v503
        %v661 = vunpack.c.l.bf16 %v504
        %v662 = vunpack.c.h.bf16 %v504
        %v663 = vunpack.c.l.bf16 %v505
        %v664 = vunpack.c.h.bf16 %v505
        %v665 = vunpack.c.l.bf16 %v506
        %v666 = vunpack.c.h.bf16 %v506
        %v667 = vunpack.c.l.bf16 %v507
        %v668 = vunpack.c.h.bf16 %v507
        %v669 = vunpack.c.l.bf16 %v508
        %v670 = vunpack.c.h.bf16 %v508
        %v671 = vunpack.c.l.bf16 %v509
        %v672 = vunpack.c.h.bf16 %v509
        %v673 = vunpack.c.l.bf16 %v510
        %v674 = vunpack.c.h.bf16 %v510
        %v675 = vxor.u32 %v659, 2147483648
        %v676 = vxor.u32 %v660, 2147483648
        %v677 = vxor.u32 %v661, 2147483648
        %v678 = vxor.u32 %v662, 2147483648
        %v679 = vxor.u32 %v663, 2147483648
        %v680 = vxor.u32 %v664, 2147483648
        %v681 = vxor.u32 %v665, 2147483648
        %v682 = vxor.u32 %v666, 2147483648
        %v683 = vxor.u32 %v667, 2147483648
        %v684 = vxor.u32 %v668, 2147483648
        %v685 = vxor.u32 %v669, 2147483648
        %v686 = vxor.u32 %v670, 2147483648
        %v687 = vxor.u32 %v671, 2147483648
        %v688 = vxor.u32 %v672, 2147483648
        %v689 = vxor.u32 %v673, 2147483648
        %v690 = vxor.u32 %v674, 2147483648
        %v691 = vmul.f32 %v675, 1.442695
        %v692 = vpow.pop %v691
        %v693 = vmul.f32 %v676, 1.442695
        %v694 = vpow.pop %v693
        %v695 = vmul.f32 %v677, 1.442695
        %v696 = vpow.pop %v695
        %v697 = vmul.f32 %v678, 1.442695
        %v698 = vpow.pop %v697
        %v699 = vmul.f32 %v679, 1.442695
        %v700 = vpow.pop %v699
        %v701 = vmul.f32 %v680, 1.442695
        %v702 = vpow.pop %v701
        %v703 = vmul.f32 %v681, 1.442695
        %v704 = vpow.pop %v703
        %v705 = vmul.f32 %v682, 1.442695
        %v706 = vpow.pop %v705
        %v707 = vmul.f32 %v683, 1.442695
        %v708 = vpow.pop %v707
        %v709 = vmul.f32 %v684, 1.442695
        %v710 = vpow.pop %v709
        %v711 = vmul.f32 %v685, 1.442695
        %v712 = vpow.pop %v711
        %v713 = vmul.f32 %v686, 1.442695
        %v714 = vpow.pop %v713
        %v715 = vmul.f32 %v687, 1.442695
        %v716 = vpow.pop %v715
        %v717 = vmul.f32 %v688, 1.442695
        %v718 = vpow.pop %v717
        %v719 = vmul.f32 %v689, 1.442695
        %v720 = vpow.pop %v719
        %v721 = vmul.f32 %v690, 1.442695
        %v722 = vpow.pop %v721
        %v723 = vadd.f32 %v692, 1.0
        %v724 = vadd.f32 %v694, 1.0
        %v725 = vadd.f32 %v696, 1.0
        %v726 = vadd.f32 %v698, 1.0
        %v727 = vadd.f32 %v700, 1.0
        %v728 = vadd.f32 %v702, 1.0
        %v729 = vadd.f32 %v704, 1.0
        %v730 = vadd.f32 %v706, 1.0
        %v731 = vadd.f32 %v708, 1.0
        %v732 = vadd.f32 %v710, 1.0
        %v733 = vadd.f32 %v712, 1.0
        %v734 = vadd.f32 %v714, 1.0
        %v735 = vadd.f32 %v716, 1.0
        %v736 = vadd.f32 %v718, 1.0
        %v737 = vadd.f32 %v720, 1.0
        %v738 = vadd.f32 %v722, 1.0
        %v739 = vrcp.pop %v723
        %v740 = vmul.f32 %v723, %v739
        %v741 = vsub.f32 1.0, %v740
        %v742 = vmul.f32 %v739, %v741
        %v743 = vadd.f32 %v739, %v742
        %vm744 = vweird.f32 %v723
        %vm745 = vweird.f32 %v739
        %vm746 = vmor %vm744, %vm745
        %v747 = vsel %vm746, %v739, %v743
        %v748 = vand.u32 2147483647, %v723
        %vm749 = vcmp.eq.f32.partialorder %v748, 8.507059e+37
        %v750 = vand.u32 %v723, 2147483648
        %v751 = vor.u32 1.1754944e-38, %v750
        %v752 = vsel %vm749, %v751, %v747
        %v753 = vmul.f32 1.0, %v752
        %v754 = vrcp.pop %v724
        %v755 = vmul.f32 %v724, %v754
        %v756 = vsub.f32 1.0, %v755
        %v757 = vmul.f32 %v754, %v756
        %v758 = vadd.f32 %v754, %v757
        %vm759 = vweird.f32 %v724
        %vm760 = vweird.f32 %v754
        %vm761 = vmor %vm759, %vm760
        %v762 = vsel %vm761, %v754, %v758
        %v763 = vand.u32 2147483647, %v724
        %vm764 = vcmp.eq.f32.partialorder %v763, 8.507059e+37
        %v765 = vand.u32 %v724, 2147483648
        %v766 = vor.u32 1.1754944e-38, %v765
        %v767 = vsel %vm764, %v766, %v762
        %v768 = vmul.f32 1.0, %v767
        %v769 = vrcp.pop %v725
        %v770 = vmul.f32 %v725, %v769
        %v771 = vsub.f32 1.0, %v770
        %v772 = vmul.f32 %v769, %v771
        %v773 = vadd.f32 %v769, %v772
        %vm774 = vweird.f32 %v725
        %vm775 = vweird.f32 %v769
        %vm776 = vmor %vm774, %vm775
        %v777 = vsel %vm776, %v769, %v773
        %v778 = vand.u32 2147483647, %v725
        %vm779 = vcmp.eq.f32.partialorder %v778, 8.507059e+37
        %v780 = vand.u32 %v725, 2147483648
        %v781 = vor.u32 1.1754944e-38, %v780
        %v782 = vsel %vm779, %v781, %v777
        %v783 = vmul.f32 1.0, %v782
        %v784 = vrcp.pop %v726
        %v785 = vmul.f32 %v726, %v784
        %v786 = vsub.f32 1.0, %v785
        %v787 = vmul.f32 %v784, %v786
        %v788 = vadd.f32 %v784, %v787
        %vm789 = vweird.f32 %v726
        %vm790 = vweird.f32 %v784
        %vm791 = vmor %vm789, %vm790
        %v792 = vsel %vm791, %v784, %v788
        %v793 = vand.u32 2147483647, %v726
        %vm794 = vcmp.eq.f32.partialorder %v793, 8.507059e+37
        %v795 = vand.u32 %v726, 2147483648
        %v796 = vor.u32 1.1754944e-38, %v795
        %v797 = vsel %vm794, %v796, %v792
        %v798 = vmul.f32 1.0, %v797
        %v799 = vrcp.pop %v727
        %v800 = vmul.f32 %v727, %v799
        %v801 = vsub.f32 1.0, %v800
        %v802 = vmul.f32 %v799, %v801
        %v803 = vadd.f32 %v799, %v802
        %vm804 = vweird.f32 %v727
        %vm805 = vweird.f32 %v799
        %vm806 = vmor %vm804, %vm805
        %v807 = vsel %vm806, %v799, %v803
        %v808 = vand.u32 2147483647, %v727
        %vm809 = vcmp.eq.f32.partialorder %v808, 8.507059e+37
        %v810 = vand.u32 %v727, 2147483648
        %v811 = vor.u32 1.1754944e-38, %v810
        %v812 = vsel %vm809, %v811, %v807
        %v813 = vmul.f32 1.0, %v812
        %v814 = vrcp.pop %v728
        %v815 = vmul.f32 %v728, %v814
        %v816 = vsub.f32 1.0, %v815
        %v817 = vmul.f32 %v814, %v816
        %v818 = vadd.f32 %v814, %v817
        %vm819 = vweird.f32 %v728
        %vm820 = vweird.f32 %v814
        %vm821 = vmor %vm819, %vm820
        %v822 = vsel %vm821, %v814, %v818
        %v823 = vand.u32 2147483647, %v728
        %vm824 = vcmp.eq.f32.partialorder %v823, 8.507059e+37
        %v825 = vand.u32 %v728, 2147483648
        %v826 = vor.u32 1.1754944e-38, %v825
        %v827 = vsel %vm824, %v826, %v822
        %v828 = vmul.f32 1.0, %v827
        %v829 = vrcp.pop %v729
        %v830 = vmul.f32 %v729, %v829
        %v831 = vsub.f32 1.0, %v830
        %v832 = vmul.f32 %v829, %v831
        %v833 = vadd.f32 %v829, %v832
        %vm834 = vweird.f32 %v729
        %vm835 = vweird.f32 %v829
        %vm836 = vmor %vm834, %vm835
        %v837 = vsel %vm836, %v829, %v833
        %v838 = vand.u32 2147483647, %v729
        %vm839 = vcmp.eq.f32.partialorder %v838, 8.507059e+37
        %v840 = vand.u32 %v729, 2147483648
        %v841 = vor.u32 1.1754944e-38, %v840
        %v842 = vsel %vm839, %v841, %v837
        %v843 = vmul.f32 1.0, %v842
        %v844 = vrcp.pop %v730
        %v845 = vmul.f32 %v730, %v844
        %v846 = vsub.f32 1.0, %v845
        %v847 = vmul.f32 %v844, %v846
        %v848 = vadd.f32 %v844, %v847
        %vm849 = vweird.f32 %v730
        %vm850 = vweird.f32 %v844
        %vm851 = vmor %vm849, %vm850
        %v852 = vsel %vm851, %v844, %v848
        %v853 = vand.u32 2147483647, %v730
        %vm854 = vcmp.eq.f32.partialorder %v853, 8.507059e+37
        %v855 = vand.u32 %v730, 2147483648
        %v856 = vor.u32 1.1754944e-38, %v855
        %v857 = vsel %vm854, %v856, %v852
        %v858 = vmul.f32 1.0, %v857
        %v859 = vrcp.pop %v731
        %v860 = vmul.f32 %v731, %v859
        %v861 = vsub.f32 1.0, %v860
        %v862 = vmul.f32 %v859, %v861
        %v863 = vadd.f32 %v859, %v862
        %vm864 = vweird.f32 %v731
        %vm865 = vweird.f32 %v859
        %vm866 = vmor %vm864, %vm865
        %v867 = vsel %vm866, %v859, %v863
        %v868 = vand.u32 2147483647, %v731
        %vm869 = vcmp.eq.f32.partialorder %v868, 8.507059e+37
        %v870 = vand.u32 %v731, 2147483648
        %v871 = vor.u32 1.1754944e-38, %v870
        %v872 = vsel %vm869, %v871, %v867
        %v873 = vmul.f32 1.0, %v872
        %v874 = vrcp.pop %v732
        %v875 = vmul.f32 %v732, %v874
        %v876 = vsub.f32 1.0, %v875
        %v877 = vmul.f32 %v874, %v876
        %v878 = vadd.f32 %v874, %v877
        %vm879 = vweird.f32 %v732
        %vm880 = vweird.f32 %v874
        %vm881 = vmor %vm879, %vm880
        %v882 = vsel %vm881, %v874, %v878
        %v883 = vand.u32 2147483647, %v732
        %vm884 = vcmp.eq.f32.partialorder %v883, 8.507059e+37
        %v885 = vand.u32 %v732, 2147483648
        %v886 = vor.u32 1.1754944e-38, %v885
        %v887 = vsel %vm884, %v886, %v882
        %v888 = vmul.f32 1.0, %v887
        %v889 = vrcp.pop %v733
        %v890 = vmul.f32 %v733, %v889
        %v891 = vsub.f32 1.0, %v890
        %v892 = vmul.f32 %v889, %v891
        %v893 = vadd.f32 %v889, %v892
        %vm894 = vweird.f32 %v733
        %vm895 = vweird.f32 %v889
        %vm896 = vmor %vm894, %vm895
        %v897 = vsel %vm896, %v889, %v893
        %v898 = vand.u32 2147483647, %v733
        %vm899 = vcmp.eq.f32.partialorder %v898, 8.507059e+37
        %v900 = vand.u32 %v733, 2147483648
        %v901 = vor.u32 1.1754944e-38, %v900
        %v902 = vsel %vm899, %v901, %v897
        %v903 = vmul.f32 1.0, %v902
        %v904 = vrcp.pop %v734
        %v905 = vmul.f32 %v734, %v904
        %v906 = vsub.f32 1.0, %v905
        %v907 = vmul.f32 %v904, %v906
        %v908 = vadd.f32 %v904, %v907
        %vm909 = vweird.f32 %v734
        %vm910 = vweird.f32 %v904
        %vm911 = vmor %vm909, %vm910
        %v912 = vsel %vm911, %v904, %v908
        %v913 = vand.u32 2147483647, %v734
        %vm914 = vcmp.eq.f32.partialorder %v913, 8.507059e+37
        %v915 = vand.u32 %v734, 2147483648
        %v916 = vor.u32 1.1754944e-38, %v915
        %v917 = vsel %vm914, %v916, %v912
        %v918 = vmul.f32 1.0, %v917
        %v919 = vrcp.pop %v735
        %v920 = vmul.f32 %v735, %v919
        %v921 = vsub.f32 1.0, %v920
        %v922 = vmul.f32 %v919, %v921
        %v923 = vadd.f32 %v919, %v922
        %vm924 = vweird.f32 %v735
        %vm925 = vweird.f32 %v919
        %vm926 = vmor %vm924, %vm925
        %v927 = vsel %vm926, %v919, %v923
        %v928 = vand.u32 2147483647, %v735
        %vm929 = vcmp.eq.f32.partialorder %v928, 8.507059e+37
        %v930 = vand.u32 %v735, 2147483648
        %v931 = vor.u32 1.1754944e-38, %v930
        %v932 = vsel %vm929, %v931, %v927
        %v933 = vmul.f32 1.0, %v932
        %v934 = vrcp.pop %v736
        %v935 = vmul.f32 %v736, %v934
        %v936 = vsub.f32 1.0, %v935
        %v937 = vmul.f32 %v934, %v936
        %v938 = vadd.f32 %v934, %v937
        %vm939 = vweird.f32 %v736
        %vm940 = vweird.f32 %v934
        %vm941 = vmor %vm939, %vm940
        %v942 = vsel %vm941, %v934, %v938
        %v943 = vand.u32 2147483647, %v736
        %vm944 = vcmp.eq.f32.partialorder %v943, 8.507059e+37
        %v945 = vand.u32 %v736, 2147483648
        %v946 = vor.u32 1.1754944e-38, %v945
        %v947 = vsel %vm944, %v946, %v942
        %v948 = vmul.f32 1.0, %v947
        %v949 = vrcp.pop %v737
        %v950 = vmul.f32 %v737, %v949
        %v951 = vsub.f32 1.0, %v950
        %v952 = vmul.f32 %v949, %v951
        %v953 = vadd.f32 %v949, %v952
        %vm954 = vweird.f32 %v737
        %vm955 = vweird.f32 %v949
        %vm956 = vmor %vm954, %vm955
        %v957 = vsel %vm956, %v949, %v953
        %v958 = vand.u32 2147483647, %v737
        %vm959 = vcmp.eq.f32.partialorder %v958, 8.507059e+37
        %v960 = vand.u32 %v737, 2147483648
        %v961 = vor.u32 1.1754944e-38, %v960
        %v962 = vsel %vm959, %v961, %v957
        %v963 = vmul.f32 1.0, %v962
        %v964 = vrcp.pop %v738
        %v965 = vmul.f32 %v738, %v964
        %v966 = vsub.f32 1.0, %v965
        %v967 = vmul.f32 %v964, %v966
        %v968 = vadd.f32 %v964, %v967
        %vm969 = vweird.f32 %v738
        %vm970 = vweird.f32 %v964
        %vm971 = vmor %vm969, %vm970
        %v972 = vsel %vm971, %v964, %v968
        %v973 = vand.u32 2147483647, %v738
        %vm974 = vcmp.eq.f32.partialorder %v973, 8.507059e+37
        %v975 = vand.u32 %v738, 2147483648
        %v976 = vor.u32 1.1754944e-38, %v975
        %v977 = vsel %vm974, %v976, %v972
        %v978 = vmul.f32 1.0, %v977
        %v979 = vsel %vm543, %v753, 0.0
        %v980 = vsel %vm544, %v768, 0.0
        %v981 = vsel %vm545, %v783, 0.0
        %v982 = vsel %vm546, %v798, 0.0
        %v983 = vsel %vm547, %v813, 0.0
        %v984 = vsel %vm548, %v828, 0.0
        %v985 = vsel %vm549, %v843, 0.0
        %v986 = vsel %vm550, %v858, 0.0
        %v987 = vsel %vm551, %v873, 0.0
        %v988 = vsel %vm552, %v888, 0.0
        %v989 = vsel %vm553, %v903, 0.0
        %v990 = vsel %vm554, %v918, 0.0
        %v991 = vsel %vm555, %v933, 0.0
        %v992 = vsel %vm556, %v948, 0.0
        %v993 = vsel %vm557, %v963, 0.0
        %v994 = vsel %vm558, %v978, 0.0
        %v995 = vpack.c.bf16 %v980, %v979
        %v996 = vpack.c.bf16 %v982, %v981
        %v997 = vpack.c.bf16 %v984, %v983
        %v998 = vpack.c.bf16 %v986, %v985
        %v999 = vpack.c.bf16 %v988, %v987
        %v1000 = vpack.c.bf16 %v990, %v989
        %v1001 = vpack.c.bf16 %v992, %v991
        %v1002 = vpack.c.bf16 %v994, %v993
        %1003 = vst [vmem:[#allocation3] sm:$0xff] %v995
        %1004 = vst [vmem:[#allocation3 + $0x8] sm:$0xff] %v996
        %1005 = vst [vmem:[#allocation3 + $0x10] sm:$0xff] %v997
        %1006 = vst [vmem:[#allocation3 + $0x18] sm:$0xff] %v998
        %1007 = vst [vmem:[#allocation3 + $0x20] sm:$0xff] %v999
        %1008 = vst [vmem:[#allocation3 + $0x28] sm:$0xff] %v1000
        %1009 = vst [vmem:[#allocation3 + $0x30] sm:$0xff] %v1001
        %1010 = vst [vmem:[#allocation3 + $0x38] sm:$0xff] %v1002
        %v1011 = vld [vmem:[#allocation4] sm:$0xff]
        %v1012 = vld [vmem:[#allocation4 + $0x8] sm:$0xff]
        %v1013 = vld [vmem:[#allocation4 + $0x10] sm:$0xff]
        %v1014 = vld [vmem:[#allocation2] sm:$0xff]
        %v1015 = vld [vmem:[#allocation2 + $0x8] sm:$0xff]
        %v1016 = vld [vmem:[#allocation2 + $0x10] sm:$0xff]
        %v1017 = vld [vmem:[#allocation2 + $0x18] sm:$0xff]
        %v1018 = vld [vmem:[#allocation2 + $0x20] sm:$0xff]
        %v1019 = vld [vmem:[#allocation2 + $0x28] sm:$0xff]
        %v1020 = vld [vmem:[#allocation2 + $0x30] sm:$0xff]
        %v1021 = vld [vmem:[#allocation2 + $0x38] sm:$0xff]
        %v1022 = vld [vmem:[#allocation2 + $0x40] sm:$0xff]
        %v1023 = vld [vmem:[#allocation2 + $0x48] sm:$0xff]
        %v1024 = vld [vmem:[#allocation2 + $0x50] sm:$0xff]
        %v1025 = vld [vmem:[#allocation2 + $0x58] sm:$0xff]
        %v1038 = vunpack.c.l.b16 %v1014
        %v1039 = vunpack.c.h.b16 %v1014
        %v1040 = vunpack.c.l.b16 %v1015
        %v1041 = vunpack.c.h.b16 %v1015
        %v1042 = vunpack.c.l.b16 %v1016
        %v1043 = vunpack.c.h.b16 %v1016
        %v1044 = vunpack.c.l.b16 %v1017
        %v1045 = vunpack.c.h.b16 %v1017
        %v1046 = vunpack.c.l.b16 %v1018
        %v1047 = vunpack.c.h.b16 %v1018
        %v1048 = vunpack.c.l.b16 %v1019
        %v1049 = vunpack.c.h.b16 %v1019
        %v1050 = vunpack.c.l.b16 %v1020
        %v1051 = vunpack.c.h.b16 %v1020
        %v1052 = vunpack.c.l.b16 %v1021
        %v1053 = vunpack.c.h.b16 %v1021
        %v1054 = vunpack.c.l.b16 %v1022
        %v1055 = vunpack.c.h.b16 %v1022
        %v1056 = vunpack.c.l.b16 %v1023
        %v1057 = vunpack.c.h.b16 %v1023
        %v1058 = vunpack.c.l.b16 %v1024
        %v1059 = vunpack.c.h.b16 %v1024
        %v1060 = vunpack.c.l.b16 %v1025
        %v1061 = vunpack.c.h.b16 %v1025
        %v1062 = vpack.c.b16 %v1046, %v1038
        %v1063 = vpack.c.b16 %v1047, %v1039
        %v1064 = vpack.c.b16 %v1048, %v1040
        %v1065 = vpack.c.b16 %v1049, %v1041
        %v1066 = vpack.c.b16 %v1050, %v1042
        %v1067 = vpack.c.b16 %v1051, %v1043
        %v1068 = vpack.c.b16 %v1052, %v1044
        %v1069 = vpack.c.b16 %v1053, %v1045
        %v1070 = vpack.c.b16 %v1054, %v1054
        %v1071 = vpack.c.b16 %v1055, %v1055
        %v1072 = vpack.c.b16 %v1056, %v1056
        %v1073 = vpack.c.b16 %v1057, %v1057
        %v1074 = vpack.c.b16 %v1058, %v1058
        %v1075 = vpack.c.b16 %v1059, %v1059
        %v1076 = vpack.c.b16 %v1060, %v1060
        %v1077 = vpack.c.b16 %v1061, %v1061
        %v1098 = vunpack.c.l.b16 %v631
        %v1099 = vunpack.c.h.b16 %v631
        %v1100 = vunpack.c.l.b16 %v632
        %v1101 = vunpack.c.h.b16 %v632
        %v1102 = vunpack.c.l.b16 %v633
        %v1103 = vunpack.c.h.b16 %v633
        %v1104 = vunpack.c.l.b16 %v634
        %v1105 = vunpack.c.h.b16 %v634
        %v1106 = vpack.c.b16 %v1098, %v1098
        %v1107 = vpack.c.b16 %v1099, %v1099
        %v1108 = vpack.c.b16 %v1100, %v1100
        %v1109 = vpack.c.b16 %v1101, %v1101
        %v1110 = vpack.c.b16 %v1102, %v1102
        %v1111 = vpack.c.b16 %v1103, %v1103
        %v1112 = vpack.c.b16 %v1104, %v1104
        %v1113 = vpack.c.b16 %v1105, %v1105
        %1122 = vmatpush.bf16.xpose.msra.mxu0 0
        %1123 = vmatpush.bf16.xpose.msra.mxu0 0
        %1124 = vmatpush.bf16.xpose.msra.mxu0 0
        %1125 = vmatpush.bf16.xpose.msra.mxu0 0
        %1126 = vmatpush.bf16.xpose.msra.mxu0 0
        %1127 = vmatpush.bf16.xpose.msra.mxu0 0
        %1128 = vmatpush.bf16.xpose.msra.mxu0 0
        %1129 = vmatpush.bf16.xpose.msra.mxu0 %v1106
        %1130 = vmatmul.bf16.gmra.mxu0 %v1062
        %v1131 = vpop.f32.mrf.mxu0
        %v1132 = vadd.f32 0.0, %v1131
        %v1133 = vpop.f32.mrf.mxu0
        %v1134 = vadd.f32 0.0, %v1133
        %1135 = vmatmul.bf16.gmra.mxu0 %v1070
        %v1136 = vpop.f32.mrf.mxu0
        %v1137 = vadd.f32 0.0, %v1136
        %v1138 = vpop.f32.mrf.mxu0
        %1139 = vdwg.mxu0
        %1140 = vmatpush.bf16.xpose.msra.mxu0 0
        %1141 = vmatpush.bf16.xpose.msra.mxu0 0
        %1142 = vmatpush.bf16.xpose.msra.mxu0 0
        %1143 = vmatpush.bf16.xpose.msra.mxu0 0
        %1144 = vmatpush.bf16.xpose.msra.mxu0 0
        %1145 = vmatpush.bf16.xpose.msra.mxu0 0
        %1146 = vmatpush.bf16.xpose.msra.mxu0 0
        %1147 = vmatpush.bf16.xpose.msra.mxu0 %v1107
        %1148 = vmatmul.bf16.gmra.mxu0 %v1063
        %v1149 = vpop.f32.mrf.mxu0
        %v1150 = vadd.f32 %v1132, %v1149
        %v1151 = vpop.f32.mrf.mxu0
        %v1152 = vadd.f32 %v1134, %v1151
        %1153 = vmatmul.bf16.gmra.mxu0 %v1071
        %v1154 = vpop.f32.mrf.mxu0
        %v1155 = vadd.f32 %v1137, %v1154
        %v1156 = vpop.f32.mrf.mxu0
        %1157 = vdwg.mxu0
        %1158 = vmatpush.bf16.xpose.msra.mxu0 0
        %1159 = vmatpush.bf16.xpose.msra.mxu0 0
        %1160 = vmatpush.bf16.xpose.msra.mxu0 0
        %1161 = vmatpush.bf16.xpose.msra.mxu0 0
        %1162 = vmatpush.bf16.xpose.msra.mxu0 0
        %1163 = vmatpush.bf16.xpose.msra.mxu0 0
        %1164 = vmatpush.bf16.xpose.msra.mxu0 0
        %1165 = vmatpush.bf16.xpose.msra.mxu0 %v1108
        %1166 = vmatmul.bf16.gmra.mxu0 %v1064
        %v1167 = vpop.f32.mrf.mxu0
        %v1168 = vadd.f32 %v1150, %v1167
        %v1169 = vpop.f32.mrf.mxu0
        %v1170 = vadd.f32 %v1152, %v1169
        %1171 = vmatmul.bf16.gmra.mxu0 %v1072
        %v1172 = vpop.f32.mrf.mxu0
        %v1173 = vadd.f32 %v1155, %v1172
        %v1174 = vpop.f32.mrf.mxu0
        %1175 = vdwg.mxu0
        %1176 = vmatpush.bf16.xpose.msra.mxu0 0
        %1177 = vmatpush.bf16.xpose.msra.mxu0 0
        %1178 = vmatpush.bf16.xpose.msra.mxu0 0
        %1179 = vmatpush.bf16.xpose.msra.mxu0 0
        %1180 = vmatpush.bf16.xpose.msra.mxu0 0
        %1181 = vmatpush.bf16.xpose.msra.mxu0 0
        %1182 = vmatpush.bf16.xpose.msra.mxu0 0
        %1183 = vmatpush.bf16.xpose.msra.mxu0 %v1109
        %1184 = vmatmul.bf16.gmra.mxu0 %v1065
        %v1185 = vpop.f32.mrf.mxu0
        %v1186 = vadd.f32 %v1168, %v1185
        %v1187 = vpop.f32.mrf.mxu0
        %v1188 = vadd.f32 %v1170, %v1187
        %1189 = vmatmul.bf16.gmra.mxu0 %v1073
        %v1190 = vpop.f32.mrf.mxu0
        %v1191 = vadd.f32 %v1173, %v1190
        %v1192 = vpop.f32.mrf.mxu0
        %1193 = vdwg.mxu0
        %1194 = vmatpush.bf16.xpose.msra.mxu0 0
        %1195 = vmatpush.bf16.xpose.msra.mxu0 0
        %1196 = vmatpush.bf16.xpose.msra.mxu0 0
        %1197 = vmatpush.bf16.xpose.msra.mxu0 0
        %1198 = vmatpush.bf16.xpose.msra.mxu0 0
        %1199 = vmatpush.bf16.xpose.msra.mxu0 0
        %1200 = vmatpush.bf16.xpose.msra.mxu0 0
        %1201 = vmatpush.bf16.xpose.msra.mxu0 %v1110
        %1202 = vmatmul.bf16.gmra.mxu0 %v1066
        %v1203 = vpop.f32.mrf.mxu0
        %v1204 = vadd.f32 %v1186, %v1203
        %v1205 = vpop.f32.mrf.mxu0
        %v1206 = vadd.f32 %v1188, %v1205
        %1207 = vmatmul.bf16.gmra.mxu0 %v1074
        %v1208 = vpop.f32.mrf.mxu0
        %v1209 = vadd.f32 %v1191, %v1208
        %v1210 = vpop.f32.mrf.mxu0
        %1211 = vdwg.mxu0
        %1212 = vmatpush.bf16.xpose.msra.mxu0 0
        %1213 = vmatpush.bf16.xpose.msra.mxu0 0
        %1214 = vmatpush.bf16.xpose.msra.mxu0 0
        %1215 = vmatpush.bf16.xpose.msra.mxu0 0
        %1216 = vmatpush.bf16.xpose.msra.mxu0 0
        %1217 = vmatpush.bf16.xpose.msra.mxu0 0
        %1218 = vmatpush.bf16.xpose.msra.mxu0 0
        %1219 = vmatpush.bf16.xpose.msra.mxu0 %v1111
        %1220 = vmatmul.bf16.gmra.mxu0 %v1067
        %v1221 = vpop.f32.mrf.mxu0
        %v1222 = vadd.f32 %v1204, %v1221
        %v1223 = vpop.f32.mrf.mxu0
        %v1224 = vadd.f32 %v1206, %v1223
        %1225 = vmatmul.bf16.gmra.mxu0 %v1075
        %v1226 = vpop.f32.mrf.mxu0
        %v1227 = vadd.f32 %v1209, %v1226
        %v1228 = vpop.f32.mrf.mxu0
        %1229 = vdwg.mxu0
        %1230 = vmatpush.bf16.xpose.msra.mxu0 0
        %1231 = vmatpush.bf16.xpose.msra.mxu0 0
        %1232 = vmatpush.bf16.xpose.msra.mxu0 0
        %1233 = vmatpush.bf16.xpose.msra.mxu0 0
        %1234 = vmatpush.bf16.xpose.msra.mxu0 0
        %1235 = vmatpush.bf16.xpose.msra.mxu0 0
        %1236 = vmatpush.bf16.xpose.msra.mxu0 0
        %1237 = vmatpush.bf16.xpose.msra.mxu0 %v1112
        %1238 = vmatmul.bf16.gmra.mxu0 %v1068
        %v1239 = vpop.f32.mrf.mxu0
        %v1240 = vadd.f32 %v1222, %v1239
        %v1241 = vpop.f32.mrf.mxu0
        %v1242 = vadd.f32 %v1224, %v1241
        %1243 = vmatmul.bf16.gmra.mxu0 %v1076
        %v1244 = vpop.f32.mrf.mxu0
        %v1245 = vadd.f32 %v1227, %v1244
        %v1246 = vpop.f32.mrf.mxu0
        %1247 = vdwg.mxu0
        %1248 = vmatpush.bf16.xpose.msra.mxu0 0
        %1249 = vmatpush.bf16.xpose.msra.mxu0 0
        %1250 = vmatpush.bf16.xpose.msra.mxu0 0
        %1251 = vmatpush.bf16.xpose.msra.mxu0 0
        %1252 = vmatpush.bf16.xpose.msra.mxu0 0
        %1253 = vmatpush.bf16.xpose.msra.mxu0 0
        %1254 = vmatpush.bf16.xpose.msra.mxu0 0
        %1255 = vmatpush.bf16.xpose.msra.mxu0 %v1113
        %1256 = vmatmul.bf16.gmra.mxu0 %v1069
        %v1257 = vpop.f32.mrf.mxu0
        %v1258 = vadd.f32 %v1240, %v1257
        %v1259 = vpop.f32.mrf.mxu0
        %v1260 = vadd.f32 %v1242, %v1259
        %1261 = vmatmul.bf16.gmra.mxu0 %v1077
        %v1262 = vpop.f32.mrf.mxu0
        %v1263 = vadd.f32 %v1245, %v1262
        %v1264 = vpop.f32.mrf.mxu0
        %1265 = vdwg.mxu0
        %v1266 = vadd.f32 %v1011, %v1258
        %v1267 = vadd.f32 %v1012, %v1260
        %v1268 = vadd.f32 %v1013, %v1263
        %vm1269 = vcmask 64512
        %1270 = vst.msk [vmem:[#allocation4] sm:$0xff] %vm1269, %v1266
        %1271 = vst.msk [vmem:[#allocation4 + $0x8] sm:$0xff] %vm1269, %v1267
        %1272 = vst.msk [vmem:[#allocation4 + $0x10] sm:$0xff] %vm1269, %v1268
        %v1273 = vld [vmem:[#allocation5] sm:$0xff]
        %v1274 = vld [vmem:[#allocation5 + $0x8] sm:$0xff]
        %v1275 = vld [vmem:[#allocation5 + $0x10] sm:$0xff]
        %v1276 = vld [vmem:[#allocation3] sm:$0xff]
        %v1277 = vld [vmem:[#allocation3 + $0x8] sm:$0xff]
        %v1278 = vld [vmem:[#allocation3 + $0x10] sm:$0xff]
        %v1279 = vld [vmem:[#allocation3 + $0x18] sm:$0xff]
        %v1280 = vld [vmem:[#allocation3 + $0x20] sm:$0xff]
        %v1281 = vld [vmem:[#allocation3 + $0x28] sm:$0xff]
        %v1282 = vld [vmem:[#allocation3 + $0x30] sm:$0xff]
        %v1283 = vld [vmem:[#allocation3 + $0x38] sm:$0xff]
        %v1284 = vld [vmem:[#allocation3 + $0x40] sm:$0xff]
        %v1285 = vld [vmem:[#allocation3 + $0x48] sm:$0xff]
        %v1286 = vld [vmem:[#allocation3 + $0x50] sm:$0xff]
        %v1287 = vld [vmem:[#allocation3 + $0x58] sm:$0xff]
        %v1288 = vpack.c.bf16 %v520, %v519
        %v1289 = vpack.c.bf16 %v522, %v521
        %v1290 = vpack.c.bf16 %v524, %v523
        %v1291 = vpack.c.bf16 %v526, %v525
        %v1304 = vunpack.c.l.b16 %v1276
        %v1305 = vunpack.c.h.b16 %v1276
        %v1306 = vunpack.c.l.b16 %v1277
        %v1307 = vunpack.c.h.b16 %v1277
        %v1308 = vunpack.c.l.b16 %v1278
        %v1309 = vunpack.c.h.b16 %v1278
        %v1310 = vunpack.c.l.b16 %v1279
        %v1311 = vunpack.c.h.b16 %v1279
        %v1312 = vunpack.c.l.b16 %v1280
        %v1313 = vunpack.c.h.b16 %v1280
        %v1314 = vunpack.c.l.b16 %v1281
        %v1315 = vunpack.c.h.b16 %v1281
        %v1316 = vunpack.c.l.b16 %v1282
        %v1317 = vunpack.c.h.b16 %v1282
        %v1318 = vunpack.c.l.b16 %v1283
        %v1319 = vunpack.c.h.b16 %v1283
        %v1320 = vunpack.c.l.b16 %v1284
        %v1321 = vunpack.c.h.b16 %v1284
        %v1322 = vunpack.c.l.b16 %v1285
        %v1323 = vunpack.c.h.b16 %v1285
        %v1324 = vunpack.c.l.b16 %v1286
        %v1325 = vunpack.c.h.b16 %v1286
        %v1326 = vunpack.c.l.b16 %v1287
        %v1327 = vunpack.c.h.b16 %v1287
        %v1328 = vpack.c.b16 %v1312, %v1304
        %v1329 = vpack.c.b16 %v1313, %v1305
        %v1330 = vpack.c.b16 %v1314, %v1306
        %v1331 = vpack.c.b16 %v1315, %v1307
        %v1332 = vpack.c.b16 %v1316, %v1308
        %v1333 = vpack.c.b16 %v1317, %v1309
        %v1334 = vpack.c.b16 %v1318, %v1310
        %v1335 = vpack.c.b16 %v1319, %v1311
        %v1336 = vpack.c.b16 %v1320, %v1320
        %v1337 = vpack.c.b16 %v1321, %v1321
        %v1338 = vpack.c.b16 %v1322, %v1322
        %v1339 = vpack.c.b16 %v1323, %v1323
        %v1340 = vpack.c.b16 %v1324, %v1324
        %v1341 = vpack.c.b16 %v1325, %v1325
        %v1342 = vpack.c.b16 %v1326, %v1326
        %v1343 = vpack.c.b16 %v1327, %v1327
        %v1364 = vunpack.c.l.b16 %v1288
        %v1365 = vunpack.c.h.b16 %v1288
        %v1366 = vunpack.c.l.b16 %v1289
        %v1367 = vunpack.c.h.b16 %v1289
        %v1368 = vunpack.c.l.b16 %v1290
        %v1369 = vunpack.c.h.b16 %v1290
        %v1370 = vunpack.c.l.b16 %v1291
        %v1371 = vunpack.c.h.b16 %v1291
        %v1372 = vpack.c.b16 %v1364, %v1364
        %v1373 = vpack.c.b16 %v1365, %v1365
        %v1374 = vpack.c.b16 %v1366, %v1366
        %v1375 = vpack.c.b16 %v1367, %v1367
        %v1376 = vpack.c.b16 %v1368, %v1368
        %v1377 = vpack.c.b16 %v1369, %v1369
        %v1378 = vpack.c.b16 %v1370, %v1370
        %v1379 = vpack.c.b16 %v1371, %v1371
        %1388 = vmatpush.bf16.xpose.msra.mxu0 0
        %1389 = vmatpush.bf16.xpose.msra.mxu0 0
        %1390 = vmatpush.bf16.xpose.msra.mxu0 0
        %1391 = vmatpush.bf16.xpose.msra.mxu0 0
        %1392 = vmatpush.bf16.xpose.msra.mxu0 0
        %1393 = vmatpush.bf16.xpose.msra.mxu0 0
        %1394 = vmatpush.bf16.xpose.msra.mxu0 0
        %1395 = vmatpush.bf16.xpose.msra.mxu0 %v1372
        %1396 = vmatmul.bf16.gmra.mxu0 %v1328
        %v1397 = vpop.f32.mrf.mxu0
        %v1398 = vadd.f32 0.0, %v1397
        %v1399 = vpop.f32.mrf.mxu0
        %v1400 = vadd.f32 0.0, %v1399
        %1401 = vmatmul.bf16.gmra.mxu0 %v1336
        %v1402 = vpop.f32.mrf.mxu0
        %v1403 = vadd.f32 0.0, %v1402
        %v1404 = vpop.f32.mrf.mxu0
        %1405 = vdwg.mxu0
        %1406 = vmatpush.bf16.xpose.msra.mxu0 0
        %1407 = vmatpush.bf16.xpose.msra.mxu0 0
        %1408 = vmatpush.bf16.xpose.msra.mxu0 0
        %1409 = vmatpush.bf16.xpose.msra.mxu0 0
        %1410 = vmatpush.bf16.xpose.msra.mxu0 0
        %1411 = vmatpush.bf16.xpose.msra.mxu0 0
        %1412 = vmatpush.bf16.xpose.msra.mxu0 0
        %1413 = vmatpush.bf16.xpose.msra.mxu0 %v1373
        %1414 = vmatmul.bf16.gmra.mxu0 %v1329
        %v1415 = vpop.f32.mrf.mxu0
        %v1416 = vadd.f32 %v1398, %v1415
        %v1417 = vpop.f32.mrf.mxu0
        %v1418 = vadd.f32 %v1400, %v1417
        %1419 = vmatmul.bf16.gmra.mxu0 %v1337
        %v1420 = vpop.f32.mrf.mxu0
        %v1421 = vadd.f32 %v1403, %v1420
        %v1422 = vpop.f32.mrf.mxu0
        %1423 = vdwg.mxu0
        %1424 = vmatpush.bf16.xpose.msra.mxu0 0
        %1425 = vmatpush.bf16.xpose.msra.mxu0 0
        %1426 = vmatpush.bf16.xpose.msra.mxu0 0
        %1427 = vmatpush.bf16.xpose.msra.mxu0 0
        %1428 = vmatpush.bf16.xpose.msra.mxu0 0
        %1429 = vmatpush.bf16.xpose.msra.mxu0 0
        %1430 = vmatpush.bf16.xpose.msra.mxu0 0
        %1431 = vmatpush.bf16.xpose.msra.mxu0 %v1374
        %1432 = vmatmul.bf16.gmra.mxu0 %v1330
        %v1433 = vpop.f32.mrf.mxu0
        %v1434 = vadd.f32 %v1416, %v1433
        %v1435 = vpop.f32.mrf.mxu0
        %v1436 = vadd.f32 %v1418, %v1435
        %1437 = vmatmul.bf16.gmra.mxu0 %v1338
        %v1438 = vpop.f32.mrf.mxu0
        %v1439 = vadd.f32 %v1421, %v1438
        %v1440 = vpop.f32.mrf.mxu0
        %1441 = vdwg.mxu0
        %1442 = vmatpush.bf16.xpose.msra.mxu0 0
        %1443 = vmatpush.bf16.xpose.msra.mxu0 0
        %1444 = vmatpush.bf16.xpose.msra.mxu0 0
        %1445 = vmatpush.bf16.xpose.msra.mxu0 0
        %1446 = vmatpush.bf16.xpose.msra.mxu0 0
        %1447 = vmatpush.bf16.xpose.msra.mxu0 0
        %1448 = vmatpush.bf16.xpose.msra.mxu0 0
        %1449 = vmatpush.bf16.xpose.msra.mxu0 %v1375
        %1450 = vmatmul.bf16.gmra.mxu0 %v1331
        %v1451 = vpop.f32.mrf.mxu0
        %v1452 = vadd.f32 %v1434, %v1451
        %v1453 = vpop.f32.mrf.mxu0
        %v1454 = vadd.f32 %v1436, %v1453
        %1455 = vmatmul.bf16.gmra.mxu0 %v1339
        %v1456 = vpop.f32.mrf.mxu0
        %v1457 = vadd.f32 %v1439, %v1456
        %v1458 = vpop.f32.mrf.mxu0
        %1459 = vdwg.mxu0
        %1460 = vmatpush.bf16.xpose.msra.mxu0 0
        %1461 = vmatpush.bf16.xpose.msra.mxu0 0
        %1462 = vmatpush.bf16.xpose.msra.mxu0 0
        %1463 = vmatpush.bf16.xpose.msra.mxu0 0
        %1464 = vmatpush.bf16.xpose.msra.mxu0 0
        %1465 = vmatpush.bf16.xpose.msra.mxu0 0
        %1466 = vmatpush.bf16.xpose.msra.mxu0 0
        %1467 = vmatpush.bf16.xpose.msra.mxu0 %v1376
        %1468 = vmatmul.bf16.gmra.mxu0 %v1332
        %v1469 = vpop.f32.mrf.mxu0
        %v1470 = vadd.f32 %v1452, %v1469
        %v1471 = vpop.f32.mrf.mxu0
        %v1472 = vadd.f32 %v1454, %v1471
        %1473 = vmatmul.bf16.gmra.mxu0 %v1340
        %v1474 = vpop.f32.mrf.mxu0
        %v1475 = vadd.f32 %v1457, %v1474
        %v1476 = vpop.f32.mrf.mxu0
        %1477 = vdwg.mxu0
        %1478 = vmatpush.bf16.xpose.msra.mxu0 0
        %1479 = vmatpush.bf16.xpose.msra.mxu0 0
        %1480 = vmatpush.bf16.xpose.msra.mxu0 0
        %1481 = vmatpush.bf16.xpose.msra.mxu0 0
        %1482 = vmatpush.bf16.xpose.msra.mxu0 0
        %1483 = vmatpush.bf16.xpose.msra.mxu0 0
        %1484 = vmatpush.bf16.xpose.msra.mxu0 0
        %1485 = vmatpush.bf16.xpose.msra.mxu0 %v1377
        %1486 = vmatmul.bf16.gmra.mxu0 %v1333
        %v1487 = vpop.f32.mrf.mxu0
        %v1488 = vadd.f32 %v1470, %v1487
        %v1489 = vpop.f32.mrf.mxu0
        %v1490 = vadd.f32 %v1472, %v1489
        %1491 = vmatmul.bf16.gmra.mxu0 %v1341
        %v1492 = vpop.f32.mrf.mxu0
        %v1493 = vadd.f32 %v1475, %v1492
        %v1494 = vpop.f32.mrf.mxu0
        %1495 = vdwg.mxu0
        %1496 = vmatpush.bf16.xpose.msra.mxu0 0
        %1497 = vmatpush.bf16.xpose.msra.mxu0 0
        %1498 = vmatpush.bf16.xpose.msra.mxu0 0
        %1499 = vmatpush.bf16.xpose.msra.mxu0 0
        %1500 = vmatpush.bf16.xpose.msra.mxu0 0
        %1501 = vmatpush.bf16.xpose.msra.mxu0 0
        %1502 = vmatpush.bf16.xpose.msra.mxu0 0
        %1503 = vmatpush.bf16.xpose.msra.mxu0 %v1378
        %1504 = vmatmul.bf16.gmra.mxu0 %v1334
        %v1505 = vpop.f32.mrf.mxu0
        %v1506 = vadd.f32 %v1488, %v1505
        %v1507 = vpop.f32.mrf.mxu0
        %v1508 = vadd.f32 %v1490, %v1507
        %1509 = vmatmul.bf16.gmra.mxu0 %v1342
        %v1510 = vpop.f32.mrf.mxu0
        %v1511 = vadd.f32 %v1493, %v1510
        %v1512 = vpop.f32.mrf.mxu0
        %1513 = vdwg.mxu0
        %1514 = vmatpush.bf16.xpose.msra.mxu0 0
        %1515 = vmatpush.bf16.xpose.msra.mxu0 0
        %1516 = vmatpush.bf16.xpose.msra.mxu0 0
        %1517 = vmatpush.bf16.xpose.msra.mxu0 0
        %1518 = vmatpush.bf16.xpose.msra.mxu0 0
        %1519 = vmatpush.bf16.xpose.msra.mxu0 0
        %1520 = vmatpush.bf16.xpose.msra.mxu0 0
        %1521 = vmatpush.bf16.xpose.msra.mxu0 %v1379
        %1522 = vmatmul.bf16.gmra.mxu0 %v1335
        %v1523 = vpop.f32.mrf.mxu0
        %v1524 = vadd.f32 %v1506, %v1523
        %v1525 = vpop.f32.mrf.mxu0
        %v1526 = vadd.f32 %v1508, %v1525
        %1527 = vmatmul.bf16.gmra.mxu0 %v1343
        %v1528 = vpop.f32.mrf.mxu0
        %v1529 = vadd.f32 %v1511, %v1528
        %v1530 = vpop.f32.mrf.mxu0
        %1531 = vdwg.mxu0
        %v1532 = vadd.f32 %v1273, %v1524
        %v1533 = vadd.f32 %v1274, %v1526
        %v1534 = vadd.f32 %v1275, %v1529
        %1535 = vst.msk [vmem:[#allocation5] sm:$0xff] %vm1269, %v1532
        %1536 = vst.msk [vmem:[#allocation5 + $0x8] sm:$0xff] %vm1269, %v1533
        %1537 = vst.msk [vmem:[#allocation5 + $0x10] sm:$0xff] %vm1269, %v1534
        %v1538 = vunpack.c.l.bf16 %v495
        %v1539 = vunpack.c.h.bf16 %v495
        %v1540 = vunpack.c.l.bf16 %v496
        %v1541 = vunpack.c.h.bf16 %v496
        %v1542 = vunpack.c.l.bf16 %v497
        %v1543 = vunpack.c.h.bf16 %v497
        %v1544 = vunpack.c.l.bf16 %v498
        %v1545 = vunpack.c.h.bf16 %v498
        %v1546 = vunpack.c.l.bf16 %v499
        %v1547 = vunpack.c.h.bf16 %v499
        %v1548 = vunpack.c.l.bf16 %v500
        %v1549 = vunpack.c.h.bf16 %v500
        %v1550 = vunpack.c.l.bf16 %v501
        %v1551 = vunpack.c.h.bf16 %v501
        %v1552 = vunpack.c.l.bf16 %v502
        %v1553 = vunpack.c.h.bf16 %v502
        %v1554 = vmax.f32 %v1538, 0.0
        %v1555 = vmax.f32 %v1539, 0.0
        %v1556 = vmax.f32 %v1540, 0.0
        %v1557 = vmax.f32 %v1541, 0.0
        %v1558 = vmax.f32 %v1542, 0.0
        %v1559 = vmax.f32 %v1543, 0.0
        %v1560 = vmax.f32 %v1544, 0.0
        %v1561 = vmax.f32 %v1545, 0.0
        %v1562 = vmax.f32 %v1546, 0.0
        %v1563 = vmax.f32 %v1547, 0.0
        %v1564 = vmax.f32 %v1548, 0.0
        %v1565 = vmax.f32 %v1549, 0.0
        %v1566 = vmax.f32 %v1550, 0.0
        %v1567 = vmax.f32 %v1551, 0.0
        %v1568 = vmax.f32 %v1552, 0.0
        %v1569 = vmax.f32 %v1553, 0.0
        %v1570 = vand.u32 2147483647, %v1538
        %v1571 = vand.u32 2147483647, %v1539
        %v1572 = vand.u32 2147483647, %v1540
        %v1573 = vand.u32 2147483647, %v1541
        %v1574 = vand.u32 2147483647, %v1542
        %v1575 = vand.u32 2147483647, %v1543
        %v1576 = vand.u32 2147483647, %v1544
        %v1577 = vand.u32 2147483647, %v1545
        %v1578 = vand.u32 2147483647, %v1546
        %v1579 = vand.u32 2147483647, %v1547
        %v1580 = vand.u32 2147483647, %v1548
        %v1581 = vand.u32 2147483647, %v1549
        %v1582 = vand.u32 2147483647, %v1550
        %v1583 = vand.u32 2147483647, %v1551
        %v1584 = vand.u32 2147483647, %v1552
        %v1585 = vand.u32 2147483647, %v1553
        %v1586 = vsub.f32 0.0, %v1570
        %v1587 = vsub.f32 0.0, %v1571
        %v1588 = vsub.f32 0.0, %v1572
        %v1589 = vsub.f32 0.0, %v1573
        %v1590 = vsub.f32 0.0, %v1574
        %v1591 = vsub.f32 0.0, %v1575
        %v1592 = vsub.f32 0.0, %v1576
        %v1593 = vsub.f32 0.0, %v1577
        %v1594 = vsub.f32 0.0, %v1578
        %v1595 = vsub.f32 0.0, %v1579
        %v1596 = vsub.f32 0.0, %v1580
        %v1597 = vsub.f32 0.0, %v1581
        %v1598 = vsub.f32 0.0, %v1582
        %v1599 = vsub.f32 0.0, %v1583
        %v1600 = vsub.f32 0.0, %v1584
        %v1601 = vsub.f32 0.0, %v1585
        %v1602 = vmul.f32 %v1586, 1.442695
        %v1603 = vpow.pop %v1602
        %v1604 = vmul.f32 %v1587, 1.442695
        %v1605 = vpow.pop %v1604
        %v1606 = vmul.f32 %v1588, 1.442695
        %v1607 = vpow.pop %v1606
        %v1608 = vmul.f32 %v1589, 1.442695
        %v1609 = vpow.pop %v1608
        %v1610 = vmul.f32 %v1590, 1.442695
        %v1611 = vpow.pop %v1610
        %v1612 = vmul.f32 %v1591, 1.442695
        %v1613 = vpow.pop %v1612
        %v1614 = vmul.f32 %v1592, 1.442695
        %v1615 = vpow.pop %v1614
        %v1616 = vmul.f32 %v1593, 1.442695
        %v1617 = vpow.pop %v1616
        %v1618 = vmul.f32 %v1594, 1.442695
        %v1619 = vpow.pop %v1618
        %v1620 = vmul.f32 %v1595, 1.442695
        %v1621 = vpow.pop %v1620
        %v1622 = vmul.f32 %v1596, 1.442695
        %v1623 = vpow.pop %v1622
        %v1624 = vmul.f32 %v1597, 1.442695
        %v1625 = vpow.pop %v1624
        %v1626 = vmul.f32 %v1598, 1.442695
        %v1627 = vpow.pop %v1626
        %v1628 = vmul.f32 %v1599, 1.442695
        %v1629 = vpow.pop %v1628
        %v1630 = vmul.f32 %v1600, 1.442695
        %v1631 = vpow.pop %v1630
        %v1632 = vmul.f32 %v1601, 1.442695
        %v1633 = vpow.pop %v1632
        %v1634 = vadd.f32 %v1603, 1.0
        %v1635 = vlog2.pop %v1634
        %v1636 = vmul.f32 %v1635, 0.6931472
        %v1637 = vmul.f32 -0.5, %v1603
        %v1638 = vadd.f32 %v1637, 1.0
        %v1639 = vmul.f32 %v1638, %v1603
        %v1640 = vand.u32 2147483647, %v1603
        %vm1641 = vcmp.lt.f32.partialorder %v1640, 0.0004427343
        %v1642 = vsel %vm1641, %v1639, %v1636
        %v1643 = vadd.f32 %v1605, 1.0
        %v1644 = vlog2.pop %v1643
        %v1645 = vmul.f32 %v1644, 0.6931472
        %v1646 = vmul.f32 -0.5, %v1605
        %v1647 = vadd.f32 %v1646, 1.0
        %v1648 = vmul.f32 %v1647, %v1605
        %v1649 = vand.u32 2147483647, %v1605
        %vm1650 = vcmp.lt.f32.partialorder %v1649, 0.0004427343
        %v1651 = vsel %vm1650, %v1648, %v1645
        %v1652 = vadd.f32 %v1607, 1.0
        %v1653 = vlog2.pop %v1652
        %v1654 = vmul.f32 %v1653, 0.6931472
        %v1655 = vmul.f32 -0.5, %v1607
        %v1656 = vadd.f32 %v1655, 1.0
        %v1657 = vmul.f32 %v1656, %v1607
        %v1658 = vand.u32 2147483647, %v1607
        %vm1659 = vcmp.lt.f32.partialorder %v1658, 0.0004427343
        %v1660 = vsel %vm1659, %v1657, %v1654
        %v1661 = vadd.f32 %v1609, 1.0
        %v1662 = vlog2.pop %v1661
        %v1663 = vmul.f32 %v1662, 0.6931472
        %v1664 = vmul.f32 -0.5, %v1609
        %v1665 = vadd.f32 %v1664, 1.0
        %v1666 = vmul.f32 %v1665, %v1609
        %v1667 = vand.u32 2147483647, %v1609
        %vm1668 = vcmp.lt.f32.partialorder %v1667, 0.0004427343
        %v1669 = vsel %vm1668, %v1666, %v1663
        %v1670 = vadd.f32 %v1611, 1.0
        %v1671 = vlog2.pop %v1670
        %v1672 = vmul.f32 %v1671, 0.6931472
        %v1673 = vmul.f32 -0.5, %v1611
        %v1674 = vadd.f32 %v1673, 1.0
        %v1675 = vmul.f32 %v1674, %v1611
        %v1676 = vand.u32 2147483647, %v1611
        %vm1677 = vcmp.lt.f32.partialorder %v1676, 0.0004427343
        %v1678 = vsel %vm1677, %v1675, %v1672
        %v1679 = vadd.f32 %v1613, 1.0
        %v1680 = vlog2.pop %v1679
        %v1681 = vmul.f32 %v1680, 0.6931472
        %v1682 = vmul.f32 -0.5, %v1613
        %v1683 = vadd.f32 %v1682, 1.0
        %v1684 = vmul.f32 %v1683, %v1613
        %v1685 = vand.u32 2147483647, %v1613
        %vm1686 = vcmp.lt.f32.partialorder %v1685, 0.0004427343
        %v1687 = vsel %vm1686, %v1684, %v1681
        %v1688 = vadd.f32 %v1615, 1.0
        %v1689 = vlog2.pop %v1688
        %v1690 = vmul.f32 %v1689, 0.6931472
        %v1691 = vmul.f32 -0.5, %v1615
        %v1692 = vadd.f32 %v1691, 1.0
        %v1693 = vmul.f32 %v1692, %v1615
        %v1694 = vand.u32 2147483647, %v1615
        %vm1695 = vcmp.lt.f32.partialorder %v1694, 0.0004427343
        %v1696 = vsel %vm1695, %v1693, %v1690
        %v1697 = vadd.f32 %v1617, 1.0
        %v1698 = vlog2.pop %v1697
        %v1699 = vmul.f32 %v1698, 0.6931472
        %v1700 = vmul.f32 -0.5, %v1617
        %v1701 = vadd.f32 %v1700, 1.0
        %v1702 = vmul.f32 %v1701, %v1617
        %v1703 = vand.u32 2147483647, %v1617
        %vm1704 = vcmp.lt.f32.partialorder %v1703, 0.0004427343
        %v1705 = vsel %vm1704, %v1702, %v1699
        %v1706 = vadd.f32 %v1619, 1.0
        %v1707 = vlog2.pop %v1706
        %v1708 = vmul.f32 %v1707, 0.6931472
        %v1709 = vmul.f32 -0.5, %v1619
        %v1710 = vadd.f32 %v1709, 1.0
        %v1711 = vmul.f32 %v1710, %v1619
        %v1712 = vand.u32 2147483647, %v1619
        %vm1713 = vcmp.lt.f32.partialorder %v1712, 0.0004427343
        %v1714 = vsel %vm1713, %v1711, %v1708
        %v1715 = vadd.f32 %v1621, 1.0
        %v1716 = vlog2.pop %v1715
        %v1717 = vmul.f32 %v1716, 0.6931472
        %v1718 = vmul.f32 -0.5, %v1621
        %v1719 = vadd.f32 %v1718, 1.0
        %v1720 = vmul.f32 %v1719, %v1621
        %v1721 = vand.u32 2147483647, %v1621
        %vm1722 = vcmp.lt.f32.partialorder %v1721, 0.0004427343
        %v1723 = vsel %vm1722, %v1720, %v1717
        %v1724 = vadd.f32 %v1623, 1.0
        %v1725 = vlog2.pop %v1724
        %v1726 = vmul.f32 %v1725, 0.6931472
        %v1727 = vmul.f32 -0.5, %v1623
        %v1728 = vadd.f32 %v1727, 1.0
        %v1729 = vmul.f32 %v1728, %v1623
        %v1730 = vand.u32 2147483647, %v1623
        %vm1731 = vcmp.lt.f32.partialorder %v1730, 0.0004427343
        %v1732 = vsel %vm1731, %v1729, %v1726
        %v1733 = vadd.f32 %v1625, 1.0
        %v1734 = vlog2.pop %v1733
        %v1735 = vmul.f32 %v1734, 0.6931472
        %v1736 = vmul.f32 -0.5, %v1625
        %v1737 = vadd.f32 %v1736, 1.0
        %v1738 = vmul.f32 %v1737, %v1625
        %v1739 = vand.u32 2147483647, %v1625
        %vm1740 = vcmp.lt.f32.partialorder %v1739, 0.0004427343
        %v1741 = vsel %vm1740, %v1738, %v1735
        %v1742 = vadd.f32 %v1627, 1.0
        %v1743 = vlog2.pop %v1742
        %v1744 = vmul.f32 %v1743, 0.6931472
        %v1745 = vmul.f32 -0.5, %v1627
        %v1746 = vadd.f32 %v1745, 1.0
        %v1747 = vmul.f32 %v1746, %v1627
        %v1748 = vand.u32 2147483647, %v1627
        %vm1749 = vcmp.lt.f32.partialorder %v1748, 0.0004427343
        %v1750 = vsel %vm1749, %v1747, %v1744
        %v1751 = vadd.f32 %v1629, 1.0
        %v1752 = vlog2.pop %v1751
        %v1753 = vmul.f32 %v1752, 0.6931472
        %v1754 = vmul.f32 -0.5, %v1629
        %v1755 = vadd.f32 %v1754, 1.0
        %v1756 = vmul.f32 %v1755, %v1629
        %v1757 = vand.u32 2147483647, %v1629
        %vm1758 = vcmp.lt.f32.partialorder %v1757, 0.0004427343
        %v1759 = vsel %vm1758, %v1756, %v1753
        %v1760 = vadd.f32 %v1631, 1.0
        %v1761 = vlog2.pop %v1760
        %v1762 = vmul.f32 %v1761, 0.6931472
        %v1763 = vmul.f32 -0.5, %v1631
        %v1764 = vadd.f32 %v1763, 1.0
        %v1765 = vmul.f32 %v1764, %v1631
        %v1766 = vand.u32 2147483647, %v1631
        %vm1767 = vcmp.lt.f32.partialorder %v1766, 0.0004427343
        %v1768 = vsel %vm1767, %v1765, %v1762
        %v1769 = vadd.f32 %v1633, 1.0
        %v1770 = vlog2.pop %v1769
        %v1771 = vmul.f32 %v1770, 0.6931472
        %v1772 = vmul.f32 -0.5, %v1633
        %v1773 = vadd.f32 %v1772, 1.0
        %v1774 = vmul.f32 %v1773, %v1633
        %v1775 = vand.u32 2147483647, %v1633
        %vm1776 = vcmp.lt.f32.partialorder %v1775, 0.0004427343
        %v1777 = vsel %vm1776, %v1774, %v1771
        %v1778 = vadd.f32 %v1554, %v1642
        %v1779 = vadd.f32 %v1555, %v1651
        %v1780 = vadd.f32 %v1556, %v1660
        %v1781 = vadd.f32 %v1557, %v1669
        %v1782 = vadd.f32 %v1558, %v1678
        %v1783 = vadd.f32 %v1559, %v1687
        %v1784 = vadd.f32 %v1560, %v1696
        %v1785 = vadd.f32 %v1561, %v1705
        %v1786 = vadd.f32 %v1562, %v1714
        %v1787 = vadd.f32 %v1563, %v1723
        %v1788 = vadd.f32 %v1564, %v1732
        %v1789 = vadd.f32 %v1565, %v1741
        %v1790 = vadd.f32 %v1566, %v1750
        %v1791 = vadd.f32 %v1567, %v1759
        %v1792 = vadd.f32 %v1568, %v1768
        %v1793 = vadd.f32 %v1569, %v1777
        %v1794 = vsel %vm591, %v1778, 0.0
        %v1795 = vsel %vm592, %v1779, 0.0
        %v1796 = vsel %vm593, %v1780, 0.0
        %v1797 = vsel %vm594, %v1781, 0.0
        %v1798 = vsel %vm595, %v1782, 0.0
        %v1799 = vsel %vm596, %v1783, 0.0
        %v1800 = vsel %vm597, %v1784, 0.0
        %v1801 = vsel %vm598, %v1785, 0.0
        %v1802 = vsel %vm599, %v1786, 0.0
        %v1803 = vsel %vm600, %v1787, 0.0
        %v1804 = vsel %vm601, %v1788, 0.0
        %v1805 = vsel %vm602, %v1789, 0.0
        %v1806 = vsel %vm603, %v1790, 0.0
        %v1807 = vsel %vm604, %v1791, 0.0
        %v1808 = vsel %vm605, %v1792, 0.0
        %v1809 = vsel %vm606, %v1793, 0.0
        %v1810 = vld [vmem:[#allocation6] sm:$0xff]
        %v1811 = vld [vmem:[#allocation6 + $0x8] sm:$0xff]
        %v1812 = vadd.f32 %v1794, %v1795
        %v1813 = vadd.f32 %v1812, %v1796
        %v1814 = vadd.f32 %v1813, %v1797
        %v1815 = vadd.f32 %v1814, %v1798
        %v1816 = vadd.f32 %v1815, %v1799
        %v1817 = vadd.f32 %v1816, %v1800
        %v1818 = vadd.f32 %v1817, %v1801
        %1819 = vadd.xlane.f32.xlu0 %v1818
        %v1820 = vpop.xlane.xlu0 %1819
        %v1821 = vadd.f32 %v1802, %v1803
        %v1822 = vadd.f32 %v1821, %v1804
        %v1823 = vadd.f32 %v1822, %v1805
        %v1824 = vadd.f32 %v1823, %v1806
        %v1825 = vadd.f32 %v1824, %v1807
        %v1826 = vadd.f32 %v1825, %v1808
        %v1827 = vadd.f32 %v1826, %v1809
        %1828 = vadd.xlane.f32.xlu0 %v1827
        %v1829 = vpop.xlane.xlu0 %1828
        %v1830 = vadd.f32 %v1810, %v1820
        %v1831 = vadd.f32 %v1811, %v1829
        %vm1832 = vcmask 7168
        %1833 = vst.msk [vmem:[#allocation6] sm:$0xff] %vm1832, %v1830
        %1834 = vst.msk [vmem:[#allocation6 + $0x8] sm:$0xff] %vm1832, %v1831
        %v1835 = vld [vmem:[#allocation7] sm:$0xff]
        %v1836 = vld [vmem:[#allocation7 + $0x8] sm:$0xff]
        %v1837 = vadd.f32 %v979, %v980
        %v1838 = vadd.f32 %v1837, %v981
        %v1839 = vadd.f32 %v1838, %v982
        %v1840 = vadd.f32 %v1839, %v983
        %v1841 = vadd.f32 %v1840, %v984
        %v1842 = vadd.f32 %v1841, %v985
        %v1843 = vadd.f32 %v1842, %v986
        %1844 = vadd.xlane.f32.xlu0 %v1843
        %v1845 = vpop.xlane.xlu0 %1844
        %v1846 = vadd.f32 %v987, %v988
        %v1847 = vadd.f32 %v1846, %v989
        %v1848 = vadd.f32 %v1847, %v990
        %v1849 = vadd.f32 %v1848, %v991
        %v1850 = vadd.f32 %v1849, %v992
        %v1851 = vadd.f32 %v1850, %v993
        %v1852 = vadd.f32 %v1851, %v994
        %1853 = vadd.xlane.f32.xlu0 %v1852
        %v1854 = vpop.xlane.xlu0 %1853
        %v1855 = vadd.f32 %v1835, %v1845
        %v1856 = vadd.f32 %v1836, %v1854
        %1857 = vst.msk [vmem:[#allocation7] sm:$0xff] %vm1832, %v1855
        %1858 = vst.msk [vmem:[#allocation7 + $0x8] sm:$0xff] %vm1832, %v1856
        // Predicated region
        $region65: #{tpu_custom_call.1} parent=43 // pred_check
          %p1859 = pneg %p465
        $region66: #{tpu_custom_call.1} parent=43 // pred_check_branch
          %1861 = sbr.rel (%p1859) target = $region68
        $region67: #{tpu_custom_call.1} parent=43 // pred_region
          %v1862 = vld [vmem:[#allocation4] sm:$0xff]
          %v1863 = vld [vmem:[#allocation4 + $0x8] sm:$0xff]
          %v1864 = vld [vmem:[#allocation5] sm:$0xff]
          %v1865 = vld [vmem:[#allocation5 + $0x8] sm:$0xff]
          %v1866 = vld [vmem:[#allocation4 + $0x10] sm:$0x1]
          %v1867 = vld [vmem:[#allocation5 + $0x10] sm:$0x1]
          %v1868 = vld [vmem:[#allocation6] sm:$0xff]
          %v1869 = vld [vmem:[#allocation6 + $0x8] sm:$0xff]
          %v1870 = vld [vmem:[#allocation7] sm:$0xff]
          %v1871 = vld [vmem:[#allocation7 + $0x8] sm:$0xff]
          %vm1872 = vcmask 57344
          %v1873 = vsel %vm1872, %v1866, 0.0
          %1874 = vadd.xlane.f32.xlu0 %v1873
          %v1875 = vpop.xlane.xlu0 %1874
          %v1876 = vmax.f32 %v1875, 1.0
          %1878 = vset.pattern.permute.xlu0 0
          %1879 = vperm.xlu0 %1878, %v1868
          %v1880 = vpop.permute.xlu0 %1879
          %1883 = vset.pattern.permute.xlu0 0
          %1884 = vperm.xlu0 %1883, %v1869
          %v1885 = vpop.permute.xlu0 %1884
          %v1887 = vsub.f32 %v1880, %v1862
          %v1888 = vsub.f32 %v1885, %v1863
          %v1889 = vrcp.pop %v1876
          %v1890 = vperm.slane %v1889, 0
          %v1891 = vmul.f32 %v1887, %v1890
          %v1892 = vmul.f32 %v1888, %v1890
          %v1893 = vmul.f32 %v1864, 2.0
          %v1894 = vmul.f32 %v1865, 2.0
          %v1895 = vadd.f32 %v1893, 1.0
          %v1896 = vadd.f32 %v1894, 1.0
          %1898 = vset.pattern.permute.xlu0 0
          %1899 = vperm.xlu0 %1898, %v1870
          %v1900 = vpop.permute.xlu0 %1899
          %1903 = vset.pattern.permute.xlu0 0
          %1904 = vperm.xlu0 %1903, %v1871
          %v1905 = vpop.permute.xlu0 %1904
          %v1907 = vperm.slane %v1867, 0
          %v1908 = vadd.f32 %v1900, %v1907
          %v1909 = vadd.f32 %v1905, %v1907
          %v1910 = vadd.f32 %v1908, 1.0
          %v1911 = vadd.f32 %v1909, 1.0
          %v1912 = vrcp.pop %v1910
          %v1913 = vrcp.pop %v1911
          %v1914 = vmul.f32 %v1895, %v1912
          %v1915 = vmul.f32 %v1896, %v1913
          %v1916 = vsub.f32 1.0, %v1914
          %v1917 = vsub.f32 1.0, %v1915
          %v1918 = vld [vmem:[%s454] sm:$0xff]
          %v1919 = vld [vmem:[%s454 + $0x8] sm:$0xff]
          %v1920 = vsub.f32 0.0, %v1918
          %v1921 = vsub.f32 0.0, %v1919
          %v1922 = vmax.f32 %v1920, 0.0
          %v1923 = vmax.f32 %v1921, 0.0
          %v1924 = vand.u32 2147483647, %v1920
          %v1925 = vand.u32 2147483647, %v1921
          %v1926 = vsub.f32 0.0, %v1924
          %v1927 = vsub.f32 0.0, %v1925
          %v1928 = vmul.f32 %v1926, 1.442695
          %v1929 = vpow.pop %v1928
          %v1930 = vmul.f32 %v1927, 1.442695
          %v1931 = vpow.pop %v1930
          %v1932 = vadd.f32 %v1929, 1.0
          %v1933 = vlog2.pop %v1932
          %v1934 = vmul.f32 %v1933, 0.6931472
          %v1935 = vmul.f32 -0.5, %v1929
          %v1936 = vadd.f32 %v1935, 1.0
          %v1937 = vmul.f32 %v1936, %v1929
          %v1938 = vand.u32 2147483647, %v1929
          %vm1939 = vcmp.lt.f32.partialorder %v1938, 0.0004427343
          %v1940 = vsel %vm1939, %v1937, %v1934
          %v1941 = vadd.f32 %v1931, 1.0
          %v1942 = vlog2.pop %v1941
          %v1943 = vmul.f32 %v1942, 0.6931472
          %v1944 = vmul.f32 -0.5, %v1931
          %v1945 = vadd.f32 %v1944, 1.0
          %v1946 = vmul.f32 %v1945, %v1931
          %v1947 = vand.u32 2147483647, %v1931
          %vm1948 = vcmp.lt.f32.partialorder %v1947, 0.0004427343
          %v1949 = vsel %vm1948, %v1946, %v1943
          %v1950 = vadd.f32 %v1922, %v1940
          %v1951 = vadd.f32 %v1923, %v1949
          %v1952 = vld [vmem:[%s458] sm:$0x3]
          %1954 = vset.pattern.permute.xlu0 1
          %1955 = vperm.xlu0 %1954, %v1918
          %v1956 = vpop.permute.xlu0 %1955
          %1959 = vset.pattern.permute.xlu0 1
          %1960 = vperm.xlu0 %1959, %v1919
          %v1961 = vpop.permute.xlu0 %1960
          %v1963 = vperm.slane %v1952, 0
          %v1964 = vsub.f32 %v1956, %v1963
          %v1965 = vsub.f32 %v1961, %v1963
          %1966 = vset.pattern.permute.xlu0 2
          %1967 = vperm.xlu0 %1966, %v1918
          %v1968 = vpop.permute.xlu0 %1967
          %1970 = vset.pattern.permute.xlu0 2
          %1971 = vperm.xlu0 %1970, %v1919
          %v1972 = vpop.permute.xlu0 %1971
          %v1974 = vperm.slane %v1952, 1
          %v1975 = vsub.f32 %v1968, %v1974
          %v1976 = vsub.f32 %v1972, %v1974
          %v1977 = vand.u32 2147483647, %v1964
          %v1978 = vand.u32 2147483647, %v1965
          %v1979 = vand.u32 2147483647, %v1975
          %v1980 = vand.u32 2147483647, %v1976
          %vm1981 = vcmp.le.f32.partialorder %v1977, 1.0
          %vm1982 = vcmp.le.f32.partialorder %v1978, 1.0
          %v1983 = vmul.f32 %v1964, 0.5
          %v1984 = vmul.f32 %v1965, 0.5
          %v1985 = vmul.f32 %v1983, %v1964
          %v1986 = vmul.f32 %v1984, %v1965
          %v1987 = vsub.f32 %v1977, 0.5
          %v1988 = vsub.f32 %v1978, 0.5
          %v1989 = vsel %vm1981, %v1985, %v1987
          %v1990 = vsel %vm1982, %v1986, %v1988
          %vm1991 = vcmp.le.f32.partialorder %v1979, 1.0
          %vm1992 = vcmp.le.f32.partialorder %v1980, 1.0
          %v1993 = vmul.f32 %v1975, 0.5
          %v1994 = vmul.f32 %v1976, 0.5
          %v1995 = vmul.f32 %v1993, %v1975
          %v1996 = vmul.f32 %v1994, %v1976
          %v1997 = vsub.f32 %v1979, 0.5
          %v1998 = vsub.f32 %v1980, 0.5
          %v1999 = vsel %vm1991, %v1995, %v1997
          %v2000 = vsel %vm1992, %v1996, %v1998
          %v2001 = vadd.f32 %v1989, %v1999
          %v2002 = vadd.f32 %v1990, %v2000
          %v2003 = vmul.f32 %v2001, 0.5
          %v2004 = vmul.f32 %v2002, 0.5
          %2006 = vset.pattern.permute.xlu0 0
          %2007 = vperm.xlu0 %2006, %v1950
          %v2008 = vpop.permute.xlu0 %2007
          %2011 = vset.pattern.permute.xlu0 0
          %2012 = vperm.xlu0 %2011, %v1951
          %v2013 = vpop.permute.xlu0 %2012
          %v2015 = vadd.f32 %v2008, %v1891
          %v2016 = vadd.f32 %v2013, %v1892
          %v2017 = vadd.f32 %v2015, %v1916
          %v2018 = vadd.f32 %v2016, %v1917
          %v2019 = vadd.f32 %v2017, %v2003
          %v2020 = vadd.f32 %v2018, %v2004
          %2021 = vst.msk [vmem:[%s463] sm:$0xff] %vm1269, %v2019
          %2022 = vst.msk [vmem:[%s463 + $0x8] sm:$0xff] %vm1269, %v2020
        $region68: #{tpu_custom_call.1} parent=43 // pred_fallthru
          _
        %p2023 = scmp.lt.s32.totalorder %s30, 1
        %s2024 = scalar_select %p2023, %s30, 1
        %s2025 = smul.addr %s2024, 2
        %s2026 = smul.addr %s2025, 8
        %s2027 = scalar_lea.vmem %s6, %s2026
        // Predicated region
        $region69: #{tpu_custom_call.1} parent=43 // pred_check
          %p2028 = pneg %p220
        $region70: #{tpu_custom_call.1} parent=43 // pred_check_branch
          %2030 = sbr.rel (%p2028) target = $region72
        $region71: #{tpu_custom_call.1} parent=43 // pred_region
          _
        $region72: #{tpu_custom_call.1} parent=43 // pred_fallthru
          _
      $region44: #{tpu_custom_call.1} parent=5 // pred_fallthru
        _
      %p2031 = scmp.le.s32.totalorder 2, %s21
      // Predicated region
      $region73: #{tpu_custom_call.1} parent=5 // pred_check
        %p2032 = pneg %p2031
      $region74: #{tpu_custom_call.1} parent=5 // pred_check_branch
        %2034 = sbr.rel (%p2032) target = $region76
      $region75: #{tpu_custom_call.1} parent=5 // pred_region
        %s2035 = ssub.s32 %s21, 2
        // Predicated region
        $region77: #{tpu_custom_call.1} parent=75 // pred_check
          %p2036 = pneg %p226
        $region78: #{tpu_custom_call.1} parent=75 // pred_check_branch
          %2038 = sbr.rel (%p2036) target = $region80
        $region79: #{tpu_custom_call.1} parent=75 // pred_region
          %p2039 = scmp.lt.s32.totalorder %s32, 1
          %s2040 = scalar_select %p2039, %s32, 1
          %s2041 = smul.addr %s2040, 2
          %s2042 = smul.addr %s2041, 8
          %s2043 = scalar_lea.vmem %s6, %s2042
        $region80: #{tpu_custom_call.1} parent=75 // pred_fallthru
          _
      $region76: #{tpu_custom_call.1} parent=5 // pred_fallthru
        _
    $region6: #{tpu_custom_call.1} parent=1 // loop_footer
      %s25 = sadd.s32 1, %s21
    $region7: #{tpu_custom_call.1} parent=1 // loop_footer_branch
      %20 = sbr.rel target = $region3
    $region8: #{tpu_custom_call.1} parent=1 // loop_exit
      _
    %2044 = vsyncpa [#allocation9], 1
    %s2045 = scalar_lea.sflag [#allocation9], 1
    %2046 = vsyncpa %s2045, 1
    %2047 = vsyncpa [#allocation11], 1
    %s2048 = scalar_lea.sflag [#allocation11], 1
    %2049 = vsyncpa %s2048, 1
    %2050 = vsyncpa [#allocation14], 1
    %s2051 = scalar_lea.sflag [#allocation14], 1
    %2052 = vsyncpa %s2051, 1

</llo_original>
